<compile_context>
chip_gen: v7x
topology: tpu7x:2x2x1
jax: 0.10.0
libtpu: 0.0.40
codegen_flags: <defaults>
</compile_context>

<pallas_src>
import math
from functools import partial

import jax
import jax.numpy as jnp
import numpy as np
from jax.experimental import pallas as pl
from jax.experimental.pallas import tpu as pltpu

# ----------------------------------------------------------------------------
# Small (but structurally faithful) configuration of the AutoEncoder.
# ----------------------------------------------------------------------------
CFG = dict(
    input_channels=3,
    output_channels=3,
    hidden_channels=32,          # must be a multiple of 32 (GroupNorm groups)
    latent_channels=4,
    double_latent_channels=True,
    channel_multipliers=(1, 2),
    num_residual_blocks=1,
    use_attention=True,
    resample_with_conv=True,
)

VMEM_LIMIT = 48 * 1024 * 1024   # fits v5e/v6e/v7x


def _cparams(sems):
    return pltpu.CompilerParams(dimension_semantics=sems,
                                vmem_limit_bytes=VMEM_LIMIT)


# ----------------------------------------------------------------------------
# Pallas kernels
# ----------------------------------------------------------------------------
def conv_tap_kernel(*refs, kh, kw, has_residual):
    """Per-image stride-1 conv: loop over kh*kw taps of the padded image, bf16 MXU,
    f32 accumulation, fused bias and optional fused residual add."""
    if has_residual:
        xp_ref, w_ref, b_ref, res_ref, o_ref = refs
    else:
        xp_ref, w_ref, b_ref, o_ref = refs
        res_ref = None

    Hp, Wp, Cin = xp_ref.shape
    Ho, Wo, Cout = o_ref.shape
    xp = xp_ref[...]                                   # (Hp, Wp, Cin) f32, whole padded image
    acc = jnp.zeros((Ho * Wo, Cout), jnp.float32)
    for dy in range(kh):
        for dx in range(kw):
            t = dy * kw + dx
            patch = jax.lax.slice(xp, (dy, dx, 0), (dy + Ho, dx + Wo, Cin))
            a = patch.reshape(Ho * Wo, Cin).astype(jnp.bfloat16)
            acc = acc + jnp.dot(a, w_ref[t], preferred_element_type=jnp.float32)
    y = (acc + b_ref[...]).reshape(Ho, Wo, Cout)
    if has_residual:
        y = y + res_ref[...]
    o_ref[...] = y


def matmul_bias_kernel(x_ref, w_ref, b_ref, o_ref):
    # x: (TM, K) f32, w: (K, N) bf16, b: (1, N) f32 -> o: (TM, N) f32
    o_ref[...] = (
        jnp.dot(x_ref[...].astype(jnp.bfloat16), w_ref[...],
                preferred_element_type=jnp.float32)
        + b_ref[...]
    )


def gn_kernel(x_ref, p_ref, g_ref, b_ref, o_ref, *, apply_silu, eps):
    # x: (H, W, C) for one image; p: (C, C) group-averaging matrix; g,b: (1, C)
    # Statistics / SiLU kept in f32 (v5e has no bf16 VPU/EUP).
    H, W, C = x_ref.shape
    x = x_ref[...].reshape(H * W, C)
    s1 = jnp.sum(x, axis=0, keepdims=True)                                   # (1, C)
    s2 = jnp.sum(x * x, axis=0, keepdims=True)                               # (1, C)
    mean = jnp.dot(s1, p_ref[...], preferred_element_type=jnp.float32)       # group mean, bcast to C
    ex2 = jnp.dot(s2, p_ref[...], preferred_element_type=jnp.float32)
    var = jnp.maximum(ex2 - mean * mean, 0.0)                                # clamp cancellation
    inv = jax.lax.rsqrt(var + eps)
    y = (x - mean) * inv * g_ref[...] + b_ref[...]
    if apply_silu:
        y = y * jax.nn.sigmoid(y)
    o_ref[...] = y.reshape(H, W, C)


def attn_block_kernel(hq_ref, hkv_ref, x_ref,
                      wq_ref, bq_ref, wk_ref, bk_ref, wv_ref, bv_ref,
                      wp_ref, bp_ref, o_ref,
                      q_scr, m_scr, l_scr, acc_scr, *, scale):
    """Fused spatial-attention block for one image.

    Per KV tile (grid axis 1, 'arbitrary'): project k/v, online-softmax accumulate.
    j == 0: project q into scratch, init running max/denom/acc.
    last j: normalize, apply output projection + bias, add residual, store.
    """
    j = pl.program_id(1)

    @pl.when(j == 0)
    def _():
        q = jnp.dot(hq_ref[...].astype(jnp.bfloat16), wq_ref[...],
                    preferred_element_type=jnp.float32) + bq_ref[...]
        q_scr[...] = q.astype(jnp.bfloat16)
        m_scr[...] = jnp.full(m_scr.shape, -jnp.inf, dtype=m_scr.dtype)
        l_scr[...] = jnp.zeros(l_scr.shape, dtype=l_scr.dtype)
        acc_scr[...] = jnp.zeros(acc_scr.shape, dtype=acc_scr.dtype)

    hkv = hkv_ref[...].astype(jnp.bfloat16)
    k = jnp.dot(hkv, wk_ref[...], preferred_element_type=jnp.float32) + bk_ref[...]
    v = jnp.dot(hkv, wv_ref[...], preferred_element_type=jnp.float32) + bv_ref[...]

    # (L, C) x (TK, C) contracting the last dims -> (L, TK); no explicit transpose.
    s = jax.lax.dot_general(q_scr[...], k.astype(jnp.bfloat16),
                            (((1,), (1,)), ((), ())),
                            preferred_element_type=jnp.float32) * scale
    m_prev = m_scr[...]
    m_new = jnp.maximum(m_prev, jnp.max(s, axis=-1, keepdims=True))
    alpha = jnp.exp(m_prev - m_new)
    p = jnp.exp(s - m_new)
    l_scr[...] = alpha * l_scr[...] + jnp.sum(p, axis=-1, keepdims=True)
    acc_scr[...] = alpha * acc_scr[...] + jnp.dot(
        p.astype(jnp.bfloat16), v.astype(jnp.bfloat16),
        preferred_element_type=jnp.float32)
    m_scr[...] = m_new

    @pl.when(j == pl.num_programs(1) - 1)
    def _():
        attn = acc_scr[...] / l_scr[...]
        proj = jnp.dot(attn.astype(jnp.bfloat16), wp_ref[...],
                       preferred_element_type=jnp.float32) + bp_ref[...]
        o_ref[...] = x_ref[...] + proj


# ----------------------------------------------------------------------------
# Pallas wrappers
# ----------------------------------------------------------------------------
def conv_stride1(x, w, b, residual=None):
    """Stride-1 conv (kernel 1x1 or 3x3) on NHWC input; optional fused residual add.

    x: (N, H, W, Cin), w: (kh, kw, Cin, Cout), b: (Cout,), residual: (N, H, W, Cout) or None.
    """
    N, H, W, Cin = x.shape
    kh, kw, _, Cout = w.shape
    ph, pw = (kh - 1) // 2, (kw - 1) // 2
    xp = jnp.pad(x, ((0, 0), (ph, ph), (pw, pw), (0, 0))) if (ph or pw) else x
    Hp, Wp = H + 2 * ph, W + 2 * pw

    w_taps = w.reshape(kh * kw, Cin, Cout).astype(jnp.bfloat16)
    b2 = b.reshape(1, Cout).astype(jnp.float32)

    kern = partial(conv_tap_kernel, kh=kh, kw=kw, has_residual=residual is not None)
    img_in = pl.BlockSpec((None, Hp, Wp, Cin), lambda n: (n, 0, 0, 0))
    img_out = pl.BlockSpec((None, H, W, Cout), lambda n: (n, 0, 0, 0))
    in_specs = [
        img_in,
        pl.BlockSpec((kh * kw, Cin, Cout), lambda n: (0, 0, 0)),
        pl.BlockSpec((1, Cout), lambda n: (0, 0)),
    ]
    args = [xp, w_taps, b2]
    if residual is not None:
        in_specs.append(img_out)
        args.append(residual)

    # TODO(synk): at production resolutions, tile the per-image block spatially (halo rows via
    # manual DMA) so the padded image does not have to fit whole in v7x's 64 MiB VMEM.
    return pl.pallas_call(
        kern,
        out_shape=jax.ShapeDtypeStruct((N, H, W, Cout), jnp.float32),
        grid=(N,),
        in_specs=in_specs,
        out_specs=img_out,
        compiler_params=_cparams(("parallel",)),
    )(*args)


def matmul_bias(x, w, b):
    """(M, K) @ (K, N) + b via Pallas, tiling M with cdiv (used only for the stride-2 im2col)."""
    M, K = x.shape
    Nc = w.shape[-1]
    TM = 512 if M >= 512 else int(pl.cdiv(M, 128)) * 128
    Mp = int(pl.cdiv(M, TM)) * TM
    xin = jnp.pad(x, ((0, Mp - M), (0, 0))) if Mp != M else x
    out = pl.pallas_call(
        matmul_bias_kernel,
        out_shape=jax.ShapeDtypeStruct((Mp, Nc), jnp.float32),
        grid=(Mp // TM,),
        in_specs=[
            pl.BlockSpec((TM, K), lambda i: (i, 0)),
            pl.BlockSpec((K, Nc), lambda i: (0, 0)),
            pl.BlockSpec((1, Nc), lambda i: (0, 0)),
        ],
        out_specs=pl.BlockSpec((TM, Nc), lambda i: (i, 0)),
        compiler_params=_cparams(("parallel",)),
    )(xin, w.astype(jnp.bfloat16), b.reshape(1, Nc).astype(jnp.float32))
    return out[:M] if Mp != M else out


def downsample_conv(x, w, b):
    """3x3 stride-2 conv with asymmetric pad (0,1,0,1). Single layer on a small tensor:
    the im2col gather stays XLA glue; the matmul runs in Pallas."""
    N, H, W, Cin = x.shape
    Cout = w.shape[-1]
    xp = jnp.pad(x, ((0, 0), (0, 1), (0, 1), (0, 0)))
    Ho, Wo = H // 2, W // 2
    patches = [
        xp[:, dy:dy + 2 * (Ho - 1) + 1:2, dx:dx + 2 * (Wo - 1) + 1:2, :]
        for dy in range(3) for dx in range(3)
    ]
    pat = jnp.stack(patches, axis=3)                      # (N, Ho, Wo, 9, Cin)
    x2d = pat.reshape(N * Ho * Wo, 9 * Cin)
    y = matmul_bias(x2d, w.reshape(9 * Cin, Cout), b)
    return y.reshape(N, Ho, Wo, Cout)


def group_norm(x, gamma, beta, apply_silu, num_groups=32, eps=1e-6):
    N, H, W, C = x.shape
    cg = C // num_groups
    gid = np.arange(C) // cg
    P = jnp.asarray((gid[:, None] == gid[None, :]).astype(np.float32) / (H * W * cg))
    kern = partial(gn_kernel, apply_silu=apply_silu, eps=eps)
    # TODO(synk): for large H*W, split into a per-group stats kernel + tiled normalize kernel so
    # whole-image blocks do not exceed v7x VMEM.
    return pl.pallas_call(
        kern,
        out_shape=jax.ShapeDtypeStruct((N, H, W, C), jnp.float32),
        grid=(N,),
        in_specs=[
            pl.BlockSpec((None, H, W, C), lambda n: (n, 0, 0, 0)),
            pl.BlockSpec((C, C), lambda n: (0, 0)),
            pl.BlockSpec((1, C), lambda n: (0, 0)),
            pl.BlockSpec((1, C), lambda n: (0, 0)),
        ],
        out_specs=pl.BlockSpec((None, H, W, C), lambda n: (n, 0, 0, 0)),
        compiler_params=_cparams(("parallel",)),
    )(x, P, gamma.reshape(1, C), beta.reshape(1, C))


def attention_block(h, x, p):
    """Fused attention block: qkv projections + KV-tiled online-softmax attention + out proj + residual."""
    N, H, W, C = h.shape
    L = H * W
    h2 = h.reshape(N, L, C)
    x2 = x.reshape(N, L, C)

    qkv_w, qkv_b = p['qkv_w'], p['qkv_b']       # (C, 3C), (3C,)
    wq = qkv_w[:, :C].astype(jnp.bfloat16)
    wk = qkv_w[:, C:2 * C].astype(jnp.bfloat16)
    wv = qkv_w[:, 2 * C:].astype(jnp.bfloat16)
    bq = qkv_b[:C].reshape(1, C)
    bk = qkv_b[C:2 * C].reshape(1, C)
    bv = qkv_b[2 * C:].reshape(1, C)
    wp = p['proj_w'].astype(jnp.bfloat16)
    bp = p['proj_b'].reshape(1, C)

    TK = L if (L <= 512 or L % 512 != 0) else 512
    n_kv = L // TK
    scale = 1.0 / math.sqrt(C)

    img = lambda n, j: (n, 0, 0)
    kv = lambda n, j: (n, j, 0)
    mat = lambda n, j: (0, 0)

    out = pl.pallas_call(
        partial(attn_block_kernel, scale=scale),
        out_shape=jax.ShapeDtypeStruct((N, L, C), jnp.float32),
        grid=(N, n_kv),
        in_specs=[
            pl.BlockSpec((None, L, C), img),      # h (query source, whole image)
            pl.BlockSpec((None, TK, C), kv),      # h (k/v tile)
            pl.BlockSpec((None, L, C), img),      # residual x
            pl.BlockSpec((C, C), mat), pl.BlockSpec((1, C), mat),   # wq, bq
            pl.BlockSpec((C, C), mat), pl.BlockSpec((1, C), mat),   # wk, bk
            pl.BlockSpec((C, C), mat), pl.BlockSpec((1, C), mat),   # wv, bv
            pl.BlockSpec((C, C), mat), pl.BlockSpec((1, C), mat),   # wp, bp
        ],
        out_specs=pl.BlockSpec((None, L, C), img),
        scratch_shapes=[
            pltpu.VMEM((L, C), jnp.bfloat16),     # q
            pltpu.VMEM((L, 1), jnp.float32),      # running max
            pltpu.VMEM((L, 1), jnp.float32),      # running denom
            pltpu.VMEM((L, C), jnp.float32),      # output accumulator
        ],
        compiler_params=_cparams(("parallel", "arbitrary")),
    )(h2, h2, x2, wq, bq, wk, bk, wv, bv, wp, bp)
    return out.reshape(N, H, W, C)


def conv1x1(x, w, b, residual=None):
    """x: (N, H, W, Cin), w: (Cin, Cout)."""
    Cin, Cout = w.shape
    return conv_stride1(x, w.reshape(1, 1, Cin, Cout), b, residual=residual)


# ----------------------------------------------------------------------------
# Parameter initialization (deterministic, synthetic; shapes mirror the torch module)
# ----------------------------------------------------------------------------
class KeyGen:
    def __init__(self, key):
        self.key = key

    def __call__(self):
        self.key, sub = jax.random.split(self.key)
        return sub


def conv_w(key, kh, kw, cin, cout, gain=1.0):
    # kaiming_normal_(nonlinearity='linear'): std = 1/sqrt(fan_in), fan_in = kh*kw*cin
    fan_in = kh * kw * cin
    w = gain * jax.random.normal(key, (kh, kw, cin, cout), jnp.float32) / np.sqrt(fan_in)
    b = jnp.zeros((cout,), jnp.float32)
    return w, b


def dense_w(key, cin, cout, gain=1.0):
    w, b = conv_w(key, 1, 1, cin, cout, gain)
    return w.reshape(cin, cout), b


def gn_params(c):
    return jnp.ones((c,), jnp.float32), jnp.zeros((c,), jnp.float32)


def init_resnet(kg, cin, cout):
    p = {}
    p['n1_g'], p['n1_b'] = gn_params(cin)
    p['c1_w'], p['c1_b'] = conv_w(kg(), 3, 3, cin, cout)
    p['n2_g'], p['n2_b'] = gn_params(cout)
    p['c2_w'], p['c2_b'] = conv_w(kg(), 3, 3, cout, cout)   # zero_init_last=False
    if cin != cout:
        p['nin_w'], p['nin_b'] = dense_w(kg(), cin, cout)   # use_conv_shortcut=False
    return ('resnet', p)


def init_attn(kg, c):
    p = {}
    p['n_g'], p['n_b'] = gn_params(c)
    p['qkv_w'], p['qkv_b'] = dense_w(kg(), c, 3 * c)
    p['proj_w'], p['proj_b'] = dense_w(kg(), c, c)
    return ('attn', p)


def init_encoder(kg, cfg):
    hidden = cfg['hidden_channels']
    mult = cfg['channel_multipliers']
    nres = cfg['num_residual_blocks']
    enc = {}
    enc['conv_in'] = conv_w(kg(), 3, 3, cfg['input_channels'], hidden)
    blocks = []
    block_in = hidden
    block_out = hidden
    for i, cm in enumerate(mult):
        block_out = cm * hidden
        for _ in range(nres):
            blocks.append(init_resnet(kg, block_in, block_out))
            block_in = block_out
        if i < len(mult) - 1:
            blocks.append(('downsample', {'conv': conv_w(kg(), 3, 3, block_out, block_out)}))
    blocks.append(init_resnet(kg, block_out, block_out))
    if cfg['use_attention']:
        blocks.append(init_attn(kg, block_out))
    blocks.append(init_resnet(kg, block_out, block_out))
    enc['blocks'] = blocks
    enc['norm_out'] = gn_params(block_out)
    out_ch = 2 * cfg['latent_channels'] if cfg['double_latent_channels'] else cfg['latent_channels']
    w, b = conv_w(kg(), 3, 3, block_out, out_ch)
    enc['conv_out'] = (w * 1.6761, b)
    return enc


def init_decoder(kg, cfg):
    hidden = cfg['hidden_channels']
    mult = cfg['channel_multipliers']
    nres = cfg['num_residual_blocks']
    dec = {}
    channels = hidden * mult[-1]
    dec['conv_in'] = conv_w(kg(), 3, 3, cfg['latent_channels'], channels)
    blocks = []
    blocks.append(init_resnet(kg, channels, channels))
    if cfg['use_attention']:
        blocks.append(init_attn(kg, channels))
    blocks.append(init_resnet(kg, channels, channels))
    block_channels = channels
    for i, cm in enumerate(mult[::-1]):
        block_channels = hidden * cm
        for _ in range(nres + 1):
            blocks.append(init_resnet(kg, channels, block_channels))
            channels = block_channels
        if i < len(mult) - 1:
            blocks.append(('upsample', {'conv': conv_w(kg(), 3, 3, block_channels, block_channels)}))
    dec['blocks'] = blocks
    dec['norm_out'] = gn_params(block_channels)
    dec['conv_out'] = conv_w(kg(), 3, 3, block_channels, cfg['output_channels'])
    return dec


def init_autoencoder(seed, cfg):
    kg = KeyGen(jax.random.PRNGKey(seed))
    params = {}
    params['encoder'] = init_encoder(kg, cfg)
    ch = 2 * cfg['latent_channels'] if cfg['double_latent_channels'] else cfg['latent_channels']
    qw, qb = dense_w(kg(), ch, ch)
    qw = qw * 0.707                               # both output halves scaled by 0.707
    qb = qb.at[ch // 2:].set(-0.9431)
    params['quant'] = (qw, qb)
    params['decoder'] = init_decoder(kg, cfg)
    params['post_quant'] = dense_w(kg(), cfg['latent_channels'], cfg['latent_channels'])
    return params


# ----------------------------------------------------------------------------
# Forward passes (orchestration in JAX, compute in Pallas kernels)
# ----------------------------------------------------------------------------
def resnet_forward(p, x):
    h = group_norm(x, p['n1_g'], p['n1_b'], apply_silu=True)
    h = conv_stride1(h, p['c1_w'], p['c1_b'])
    h = group_norm(h, p['n2_g'], p['n2_b'], apply_silu=True)
    # dropout_probability = 0.0 -> identity
    sc = x
    if 'nin_w' in p:
        sc = conv1x1(x, p['nin_w'], p['nin_b'])
    # residual add fused into the second conv's epilogue
    return conv_stride1(h, p['c2_w'], p['c2_b'], residual=sc)


def attn_forward(p, x):
    h = group_norm(x, p['n_g'], p['n_b'], apply_silu=False)
    return attention_block(h, x, p)   # projections + attention + out proj + residual, one kernel


def apply_block(kind, p, x):
    if kind == 'resnet':
        return resnet_forward(p, x)
    if kind == 'attn':
        return attn_forward(p, x)
    if kind == 'downsample':
        w, b = p['conv']
        return downsample_conv(x, w, b)
    if kind == 'upsample':
        # TODO(synk): fold the 2x nearest-neighbor repeat into the following conv's index_map to
        # remove one extra HBM pass; kept as XLA glue here.
        x = jnp.repeat(jnp.repeat(x, 2, axis=1), 2, axis=2)
        w, b = p['conv']
        return conv_stride1(x, w, b)
    raise ValueError(kind)


def encoder_forward(p, x):
    h = conv_stride1(x, *p['conv_in'])
    for kind, bp in p['blocks']:
        h = apply_block(kind, bp, h)
    h = group_norm(h, *p['norm_out'], apply_silu=True)
    h = conv_stride1(h, *p['conv_out'])
    return h


def decoder_forward(p, x):
    h = conv_stride1(x, *p['conv_in'])
    for kind, bp in p['blocks']:
        h = apply_block(kind, bp, h)
    h = group_norm(h, *p['norm_out'], apply_silu=True)
    h = conv_stride1(h, *p['conv_out'])
    return h


def autoencoder_forward(params, cfg, x_nchw, sample_key):
    """Mirrors AutoEncoder.forward: encode -> sample -> decode."""
    x = jnp.transpose(x_nchw, (0, 2, 3, 1)).astype(jnp.float32)   # NCHW -> NHWC
    # encode
    h = encoder_forward(params['encoder'], x)
    moments = conv1x1(h, *params['quant'])
    lat = cfg['latent_channels']
    mean, log_var = moments[..., :lat], moments[..., lat:]
    # GaussianDistribution.sample()
    std = jnp.exp(0.5 * log_var)
    eps = jax.random.normal(sample_key, mean.shape, jnp.float32)
    z = mean + std * eps
    # decode
    zq = conv1x1(z, *params['post_quant'])
    x_recon = decoder_forward(params['decoder'], zq)
    to_nchw = lambda t: jnp.transpose(t, (0, 3, 1, 2))
    return {
        'x_recon': to_nchw(x_recon),
        'latents': to_nchw(z),
        'mean': to_nchw(mean),
        'log_var': to_nchw(log_var),
    }


# ----------------------------------------------------------------------------
if __name__ == "__main__":
    key = jax.random.PRNGKey(0)
    k_in, k_sample = jax.random.split(key)

    params = init_autoencoder(seed=0, cfg=CFG)

    # PyTorch-style NCHW input: batch=2, channels=3, spatial=16x16
    x = jax.random.normal(k_in, (2, CFG['input_channels'], 16, 16), jnp.float32)

    out = autoencoder_forward(params, CFG, x, k_sample)
    jax.block_until_ready(out['x_recon'])
    jax.block_until_ready(out['latents'])

    assert out['x_recon'].shape == (2, 3, 16, 16)
    assert out['latents'].shape == (2, 4, 8, 8)
    assert out['mean'].shape == (2, 4, 8, 8)
    assert out['log_var'].shape == (2, 4, 8, 8)
    assert all(bool(jnp.all(jnp.isfinite(v))) for v in out.values())

    print("KERNEL_OK")
</pallas_src>

<mosaic_0001>
module attributes {stable_mosaic.version = 11 : i64} {
  func.func @conv_tap_kernel(%arg0: i32, %arg1: memref<1x18x18x3xf32, #tpu.memory_space<vmem>>, %arg2: memref<9x3x32xbf16, #tpu.memory_space<vmem>>, %arg3: memref<1x32xf32, #tpu.memory_space<vmem>>, %arg4: memref<1x16x16x32xf32, #tpu.memory_space<vmem>>) attributes {dimension_semantics = [#tpu.dimension_semantics<parallel>], iteration_bounds = array<i64: 2>, scalar_prefetch = 0 : i64, scratch_operands = 0 : i64, tpu.core_type = #tpu.core_type<tc>, window_params = [{transform_indices = @transform_0, window_bounds = array<i64: 1, 18, 18, 3>}, {pipeline_mode = #tpu.pipeline_mode<synchronous>, transform_indices = @transform_1, window_bounds = array<i64: 9, 3, 32>}, {pipeline_mode = #tpu.pipeline_mode<synchronous>, transform_indices = @transform_2, window_bounds = array<i64: 1, 32>}, {transform_indices = @transform_3, window_bounds = array<i64: 1, 16, 16, 32>}]} {
    %c0 = arith.constant 0 : index
    %c0_0 = arith.constant 0 : index
    %c0_1 = arith.constant 0 : index
    %c0_2 = arith.constant 0 : index
    %0 = vector.load %arg1[%c0, %c0_0, %c0_1, %c0_2] : memref<1x18x18x3xf32, #tpu.memory_space<vmem>>, vector<1x18x18x3xf32>
    %1 = vector.shape_cast %0 : vector<1x18x18x3xf32> to vector<18x18x3xf32>
    %cst = arith.constant 0.000000e+00 : f32
    %2 = vector.broadcast %cst : f32 to vector<256x32xf32>
    %3 = vector.extract_strided_slice %1 {offsets = [0, 0, 0], sizes = [16, 16, 3], strides = [1, 1, 1]} : vector<18x18x3xf32> to vector<16x16x3xf32>
    %4 = vector.shape_cast %3 : vector<16x16x3xf32> to vector<256x3xf32>
    %5 = arith.truncf %4 : vector<256x3xf32> to vector<256x3xbf16>
    %c0_3 = arith.constant 0 : index
    %c0_4 = arith.constant 0 : index
    %c0_5 = arith.constant 0 : index
    %6 = vector.load %arg2[%c0_3, %c0_4, %c0_5] : memref<9x3x32xbf16, #tpu.memory_space<vmem>>, vector<1x3x32xbf16>
    %7 = vector.shape_cast %6 : vector<1x3x32xbf16> to vector<3x32xbf16>
    %cst_6 = arith.constant dense<0.000000e+00> : vector<256x32xf32>
    %8 = tpu.matmul %5, %7, %cst_6 {dimension_numbers = #tpu.dot_dimension_numbers<[1], [0], [0], [1], [0, 0, 1, 1], [], []>} : vector<256x3xbf16>, vector<3x32xbf16>, vector<256x32xf32> -> vector<256x32xf32>
    %9 = arith.addf %2, %8 : vector<256x32xf32>
    %10 = vector.extract_strided_slice %1 {offsets = [0, 1, 0], sizes = [16, 16, 3], strides = [1, 1, 1]} : vector<18x18x3xf32> to vector<16x16x3xf32>
    %11 = vector.shape_cast %10 : vector<16x16x3xf32> to vector<256x3xf32>
    %12 = arith.truncf %11 : vector<256x3xf32> to vector<256x3xbf16>
    %c1 = arith.constant 1 : index
    %c0_7 = arith.constant 0 : index
    %c0_8 = arith.constant 0 : index
    %13 = vector.load %arg2[%c1, %c0_7, %c0_8] : memref<9x3x32xbf16, #tpu.memory_space<vmem>>, vector<1x3x32xbf16>
    %14 = vector.shape_cast %13 : vector<1x3x32xbf16> to vector<3x32xbf16>
    %cst_9 = arith.constant dense<0.000000e+00> : vector<256x32xf32>
    %15 = tpu.matmul %12, %14, %cst_9 {dimension_numbers = #tpu.dot_dimension_numbers<[1], [0], [0], [1], [0, 0, 1, 1], [], []>} : vector<256x3xbf16>, vector<3x32xbf16>, vector<256x32xf32> -> vector<256x32xf32>
    %16 = arith.addf %9, %15 : vector<256x32xf32>
    %17 = vector.extract_strided_slice %1 {offsets = [0, 2, 0], sizes = [16, 16, 3], strides = [1, 1, 1]} : vector<18x18x3xf32> to vector<16x16x3xf32>
    %18 = vector.shape_cast %17 : vector<16x16x3xf32> to vector<256x3xf32>
    %19 = arith.truncf %18 : vector<256x3xf32> to vector<256x3xbf16>
    %c2 = arith.constant 2 : index
    %c0_10 = arith.constant 0 : index
    %c0_11 = arith.constant 0 : index
    %20 = vector.load %arg2[%c2, %c0_10, %c0_11] : memref<9x3x32xbf16, #tpu.memory_space<vmem>>, vector<1x3x32xbf16>
    %21 = vector.shape_cast %20 : vector<1x3x32xbf16> to vector<3x32xbf16>
    %cst_12 = arith.constant dense<0.000000e+00> : vector<256x32xf32>
    %22 = tpu.matmul %19, %21, %cst_12 {dimension_numbers = #tpu.dot_dimension_numbers<[1], [0], [0], [1], [0, 0, 1, 1], [], []>} : vector<256x3xbf16>, vector<3x32xbf16>, vector<256x32xf32> -> vector<256x32xf32>
    %23 = arith.addf %16, %22 : vector<256x32xf32>
    %24 = vector.extract_strided_slice %1 {offsets = [1, 0, 0], sizes = [16, 16, 3], strides = [1, 1, 1]} : vector<18x18x3xf32> to vector<16x16x3xf32>
    %25 = vector.shape_cast %24 : vector<16x16x3xf32> to vector<256x3xf32>
    %26 = arith.truncf %25 : vector<256x3xf32> to vector<256x3xbf16>
    %c3 = arith.constant 3 : index
    %c0_13 = arith.constant 0 : index
    %c0_14 = arith.constant 0 : index
    %27 = vector.load %arg2[%c3, %c0_13, %c0_14] : memref<9x3x32xbf16, #tpu.memory_space<vmem>>, vector<1x3x32xbf16>
    %28 = vector.shape_cast %27 : vector<1x3x32xbf16> to vector<3x32xbf16>
    %cst_15 = arith.constant dense<0.000000e+00> : vector<256x32xf32>
    %29 = tpu.matmul %26, %28, %cst_15 {dimension_numbers = #tpu.dot_dimension_numbers<[1], [0], [0], [1], [0, 0, 1, 1], [], []>} : vector<256x3xbf16>, vector<3x32xbf16>, vector<256x32xf32> -> vector<256x32xf32>
    %30 = arith.addf %23, %29 : vector<256x32xf32>
    %31 = vector.extract_strided_slice %1 {offsets = [1, 1, 0], sizes = [16, 16, 3], strides = [1, 1, 1]} : vector<18x18x3xf32> to vector<16x16x3xf32>
    %32 = vector.shape_cast %31 : vector<16x16x3xf32> to vector<256x3xf32>
    %33 = arith.truncf %32 : vector<256x3xf32> to vector<256x3xbf16>
    %c4 = arith.constant 4 : index
    %c0_16 = arith.constant 0 : index
    %c0_17 = arith.constant 0 : index
    %34 = vector.load %arg2[%c4, %c0_16, %c0_17] : memref<9x3x32xbf16, #tpu.memory_space<vmem>>, vector<1x3x32xbf16>
    %35 = vector.shape_cast %34 : vector<1x3x32xbf16> to vector<3x32xbf16>
    %cst_18 = arith.constant dense<0.000000e+00> : vector<256x32xf32>
    %36 = tpu.matmul %33, %35, %cst_18 {dimension_numbers = #tpu.dot_dimension_numbers<[1], [0], [0], [1], [0, 0, 1, 1], [], []>} : vector<256x3xbf16>, vector<3x32xbf16>, vector<256x32xf32> -> vector<256x32xf32>
    %37 = arith.addf %30, %36 : vector<256x32xf32>
    %38 = vector.extract_strided_slice %1 {offsets = [1, 2, 0], sizes = [16, 16, 3], strides = [1, 1, 1]} : vector<18x18x3xf32> to vector<16x16x3xf32>
    %39 = vector.shape_cast %38 : vector<16x16x3xf32> to vector<256x3xf32>
    %40 = arith.truncf %39 : vector<256x3xf32> to vector<256x3xbf16>
    %c5 = arith.constant 5 : index
    %c0_19 = arith.constant 0 : index
    %c0_20 = arith.constant 0 : index
    %41 = vector.load %arg2[%c5, %c0_19, %c0_20] : memref<9x3x32xbf16, #tpu.memory_space<vmem>>, vector<1x3x32xbf16>
    %42 = vector.shape_cast %41 : vector<1x3x32xbf16> to vector<3x32xbf16>
    %cst_21 = arith.constant dense<0.000000e+00> : vector<256x32xf32>
    %43 = tpu.matmul %40, %42, %cst_21 {dimension_numbers = #tpu.dot_dimension_numbers<[1], [0], [0], [1], [0, 0, 1, 1], [], []>} : vector<256x3xbf16>, vector<3x32xbf16>, vector<256x32xf32> -> vector<256x32xf32>
    %44 = arith.addf %37, %43 : vector<256x32xf32>
    %45 = vector.extract_strided_slice %1 {offsets = [2, 0, 0], sizes = [16, 16, 3], strides = [1, 1, 1]} : vector<18x18x3xf32> to vector<16x16x3xf32>
    %46 = vector.shape_cast %45 : vector<16x16x3xf32> to vector<256x3xf32>
    %47 = arith.truncf %46 : vector<256x3xf32> to vector<256x3xbf16>
    %c6 = arith.constant 6 : index
    %c0_22 = arith.constant 0 : index
    %c0_23 = arith.constant 0 : index
    %48 = vector.load %arg2[%c6, %c0_22, %c0_23] : memref<9x3x32xbf16, #tpu.memory_space<vmem>>, vector<1x3x32xbf16>
    %49 = vector.shape_cast %48 : vector<1x3x32xbf16> to vector<3x32xbf16>
    %cst_24 = arith.constant dense<0.000000e+00> : vector<256x32xf32>
    %50 = tpu.matmul %47, %49, %cst_24 {dimension_numbers = #tpu.dot_dimension_numbers<[1], [0], [0], [1], [0, 0, 1, 1], [], []>} : vector<256x3xbf16>, vector<3x32xbf16>, vector<256x32xf32> -> vector<256x32xf32>
    %51 = arith.addf %44, %50 : vector<256x32xf32>
    %52 = vector.extract_strided_slice %1 {offsets = [2, 1, 0], sizes = [16, 16, 3], strides = [1, 1, 1]} : vector<18x18x3xf32> to vector<16x16x3xf32>
    %53 = vector.shape_cast %52 : vector<16x16x3xf32> to vector<256x3xf32>
    %54 = arith.truncf %53 : vector<256x3xf32> to vector<256x3xbf16>
    %c7 = arith.constant 7 : index
    %c0_25 = arith.constant 0 : index
    %c0_26 = arith.constant 0 : index
    %55 = vector.load %arg2[%c7, %c0_25, %c0_26] : memref<9x3x32xbf16, #tpu.memory_space<vmem>>, vector<1x3x32xbf16>
    %56 = vector.shape_cast %55 : vector<1x3x32xbf16> to vector<3x32xbf16>
    %cst_27 = arith.constant dense<0.000000e+00> : vector<256x32xf32>
    %57 = tpu.matmul %54, %56, %cst_27 {dimension_numbers = #tpu.dot_dimension_numbers<[1], [0], [0], [1], [0, 0, 1, 1], [], []>} : vector<256x3xbf16>, vector<3x32xbf16>, vector<256x32xf32> -> vector<256x32xf32>
    %58 = arith.addf %51, %57 : vector<256x32xf32>
    %59 = vector.extract_strided_slice %1 {offsets = [2, 2, 0], sizes = [16, 16, 3], strides = [1, 1, 1]} : vector<18x18x3xf32> to vector<16x16x3xf32>
    %60 = vector.shape_cast %59 : vector<16x16x3xf32> to vector<256x3xf32>
    %61 = arith.truncf %60 : vector<256x3xf32> to vector<256x3xbf16>
    %c8 = arith.constant 8 : index
    %c0_28 = arith.constant 0 : index
    %c0_29 = arith.constant 0 : index
    %62 = vector.load %arg2[%c8, %c0_28, %c0_29] : memref<9x3x32xbf16, #tpu.memory_space<vmem>>, vector<1x3x32xbf16>
    %63 = vector.shape_cast %62 : vector<1x3x32xbf16> to vector<3x32xbf16>
    %cst_30 = arith.constant dense<0.000000e+00> : vector<256x32xf32>
    %64 = tpu.matmul %61, %63, %cst_30 {dimension_numbers = #tpu.dot_dimension_numbers<[1], [0], [0], [1], [0, 0, 1, 1], [], []>} : vector<256x3xbf16>, vector<3x32xbf16>, vector<256x32xf32> -> vector<256x32xf32>
    %65 = arith.addf %58, %64 : vector<256x32xf32>
    %c0_31 = arith.constant 0 : index
    %c0_32 = arith.constant 0 : index
    %66 = vector.load %arg3[%c0_31, %c0_32] : memref<1x32xf32, #tpu.memory_space<vmem>>, vector<1x32xf32>
    %67 = vector.broadcast %66 : vector<1x32xf32> to vector<256x32xf32>
    %68 = arith.addf %65, %67 : vector<256x32xf32>
    %69 = vector.shape_cast %68 : vector<256x32xf32> to vector<16x16x32xf32>
    %c0_33 = arith.constant 0 : index
    %c0_34 = arith.constant 0 : index
    %c0_35 = arith.constant 0 : index
    %c0_36 = arith.constant 0 : index
    %70 = vector.load %arg4[%c0_33, %c0_34, %c0_35, %c0_36] : memref<1x16x16x32xf32, #tpu.memory_space<vmem>>, vector<1x16x16x32xf32>
    %71 = vector.shape_cast %70 : vector<1x16x16x32xf32> to vector<16x16x32xf32>
    %72 = vector.shape_cast %69 : vector<16x16x32xf32> to vector<1x16x16x32xf32>
    tpu.vector_store %arg4[%c0_33, %c0_34, %c0_35, %c0_36], %72 {strides = array<i32>} : memref<1x16x16x32xf32, #tpu.memory_space<vmem>>, vector<1x16x16x32xf32>,
    return
  }
  func.func @transform_0(%arg0: i32) -> (i32, i32, i32, i32) {
    %c0_i32 = arith.constant 0 : i32
    %c0_i32_0 = arith.constant 0 : i32
    %c0_i32_1 = arith.constant 0 : i32
    %c0_i32_2 = arith.constant 0 : i32
    return %arg0, %c0_i32, %c0_i32_0, %c0_i32_1 : i32, i32, i32, i32
  }
  func.func @transform_1(%arg0: i32) -> (i32, i32, i32) {
    %c0_i32 = arith.constant 0 : i32
    %c0_i32_0 = arith.constant 0 : i32
    %c0_i32_1 = arith.constant 0 : i32
    %c0_i32_2 = arith.constant 0 : i32
    return %c0_i32, %c0_i32_0, %c0_i32_1 : i32, i32, i32
  }
  func.func @transform_2(%arg0: i32) -> (i32, i32) {
    %c0_i32 = arith.constant 0 : i32
    %c0_i32_0 = arith.constant 0 : i32
    %c0_i32_1 = arith.constant 0 : i32
    return %c0_i32, %c0_i32_0 : i32, i32
  }
  func.func @transform_3(%arg0: i32) -> (i32, i32, i32, i32) {
    %c0_i32 = arith.constant 0 : i32
    %c0_i32_0 = arith.constant 0 : i32
    %c0_i32_1 = arith.constant 0 : i32
    %c0_i32_2 = arith.constant 0 : i32
    return %arg0, %c0_i32, %c0_i32_0, %c0_i32_1 : i32, i32, i32, i32
  }
}

</mosaic_0001>

<llo_original>
// kernel: tpu_custom_call.1
$region0: #{tpu_custom_call.1}
  #allocation0 [shape = 'u32[]', space=smem, size = 0x4, offset = 0x4, fixed_abs, tag = 'smem constant byte address 0x4 - core index']
  #allocation1 [shape = 'u32[144,128]{1,0:T(1,128)}', space=vmem, size = 0x12000, scoped, tag = 'internal scratch']
  %s0 = inlined_call_operand.vmem [shape: f32[2,18,18,3], index: 0, kind: input, shape index: {}]
  %s1 = inlined_call_operand.vmem [shape: bf16[9,3,32], index: 1, kind: input, shape index: {}]
  %s2 = inlined_call_operand.vmem [shape: f32[1,32], index: 2, kind: input, shape index: {}]
  %s3 = inlined_call_operand.hbm [shape: f32[2,16,16,32], index: 3, kind: output, shape index: {}]
  %s4 = sld [smem:[#allocation0]]
  $region45: #{tpu_custom_call.1} parent=0
    _
  %s6 = ssub.s32 1, %s4
  %s7 = scalar_select 0, %s6, %s4
  $region1: #{tpu_custom_call.1} parent=0
    #allocation2 [shape = 'u8[262144]{0}', space=vmem, size = 0x40000, scoped, tag = 'output window, operand 0']
    #allocation3 [shape = 's32[2]{0}', space=sflag, size = 0x8, scoped, tag = 'scoped memory for tpu_custom_call.1']
    %8 = vsyncpa [#allocation3], 0
    %s9 = scalar_lea.sflag [#allocation3], 1
    %10 = vsyncpa %s9, 0
    loop: start=0, step=1, limit=4
    $region2: #{tpu_custom_call.1} parent=1 // loop_pre_header
      _
    $region3: #{tpu_custom_call.1} parent=1 // loop_header
      %s12 = sphi 0, %s16
      %p13 = scmp.ge.s32.totalorder %s12, 4
      %s22 = sphi 0, %s24
      %s25 = sphi 0, %s22
      %s26 = sphi 0, %s25
      %s42 = sphi 0, %s26
      %s46 = sphi 0, %s46
      %s48 = sphi 0, %s46
      %s49 = sphi 0, %s48
      %s63 = sphi 0, %s49
      %s67 = sphi 0, %s67
      %s69 = sphi 0, %s67
      %s70 = sphi 0, %s69
      %s84 = sphi 0, %s70
      %s90 = sphi 0, %s92
      %s93 = sphi 0, %s90
      %s94 = sphi 0, %s93
      %s110 = sphi 0, %s94
    $region4: #{tpu_custom_call.1} parent=1 // loop_header_branch
      %15 = sbr.rel (%p13) target = $region8
    $region5: #{tpu_custom_call.1} parent=1 // loop_body
      %s17 = ssub.s32 %s12, 1
      %s18 = ssub.s32 %s12, 2
      %s19 = sadd.s32 %s12, 1
      %s20 = ssub.s32 %s12, %s19
      %p21 = scmp.eq.s32.totalorder %s20, 0
      %s23 = sadd.s32 %s22, 1
      %s24 = scalar_select %p21, %s22, %s23
      %p27 = pneg %p21
      %p28 = scmp.eq.s32.totalorder %s12, 1
      %p29 = por %p27, %p28
      %p30 = scmp.ne.s32.totalorder %s22, %s25
      %p31 = scmp.eq.s32.totalorder %s12, 0
      %p32 = por %p30, %p31
      %p33 = scmp.ne.s32.totalorder %s22, %s25
      %p34 = scmp.eq.s32.totalorder %s17, 1
      %p35 = por %p33, %p34
      %p36 = scmp.ne.s32.totalorder %s25, %s26
      %p37 = scmp.eq.s32.totalorder %s17, 0
      %p38 = por %p36, %p37
      %p39 = scmp.ne.s32.totalorder %s25, %s26
      %p40 = scmp.eq.s32.totalorder %s18, 1
      %p41 = por %p39, %p40
      %p43 = scmp.ne.s32.totalorder %s26, %s42
      %p44 = scmp.eq.s32.totalorder %s18, 0
      %p45 = por %p43, %p44
      %s47 = sadd.s32 %s46, 1
      %p50 = scmp.eq.s32.totalorder %s12, 1
      %p51 = scmp.ne.s32.totalorder %s46, %s48
      %p52 = scmp.eq.s32.totalorder %s12, 0
      %p53 = por %p51, %p52
      %p54 = scmp.ne.s32.totalorder %s46, %s48
      %p55 = scmp.eq.s32.totalorder %s17, 1
      %p56 = por %p54, %p55
      %p57 = scmp.ne.s32.totalorder %s48, %s49
      %p58 = scmp.eq.s32.totalorder %s17, 0
      %p59 = por %p57, %p58
      %p60 = scmp.ne.s32.totalorder %s48, %s49
      %p61 = scmp.eq.s32.totalorder %s18, 1
      %p62 = por %p60, %p61
      %p64 = scmp.ne.s32.totalorder %s49, %s63
      %p65 = scmp.eq.s32.totalorder %s18, 0
      %p66 = por %p64, %p65
      %s68 = sadd.s32 %s67, 1
      %p71 = scmp.eq.s32.totalorder %s12, 1
      %p72 = scmp.ne.s32.totalorder %s67, %s69
      %p73 = scmp.eq.s32.totalorder %s12, 0
      %p74 = por %p72, %p73
      %p75 = scmp.ne.s32.totalorder %s67, %s69
      %p76 = scmp.eq.s32.totalorder %s17, 1
      %p77 = por %p75, %p76
      %p78 = scmp.ne.s32.totalorder %s69, %s70
      %p79 = scmp.eq.s32.totalorder %s17, 0
      %p80 = por %p78, %p79
      %p81 = scmp.ne.s32.totalorder %s69, %s70
      %p82 = scmp.eq.s32.totalorder %s18, 1
      %p83 = por %p81, %p82
      %p85 = scmp.ne.s32.totalorder %s70, %s84
      %p86 = scmp.eq.s32.totalorder %s18, 0
      %p87 = por %p85, %p86
      %s88 = ssub.s32 %s12, %s19
      %p89 = scmp.eq.s32.totalorder %s88, 0
      %s91 = sadd.s32 %s90, 1
      %s92 = scalar_select %p89, %s90, %s91
      %p95 = pneg %p89
      %p96 = scmp.eq.s32.totalorder %s12, 1
      %p97 = por %p95, %p96
      %p98 = scmp.ne.s32.totalorder %s90, %s93
      %p99 = scmp.eq.s32.totalorder %s12, 0
      %p100 = por %p98, %p99
      %p101 = scmp.ne.s32.totalorder %s90, %s93
      %p102 = scmp.eq.s32.totalorder %s17, 1
      %p103 = por %p101, %p102
      %p104 = scmp.ne.s32.totalorder %s93, %s94
      %p105 = scmp.eq.s32.totalorder %s17, 0
      %p106 = por %p104, %p105
      %p107 = scmp.ne.s32.totalorder %s93, %s94
      %p108 = scmp.eq.s32.totalorder %s18, 1
      %p109 = por %p107, %p108
      %p111 = scmp.ne.s32.totalorder %s94, %s110
      %p112 = scmp.eq.s32.totalorder %s18, 0
      %p113 = por %p111, %p112
      %p114 = scmp.le.s32.totalorder 1, %s12
      %p115 = scmp.lt.s32.totalorder %s12, 3
      %p116 = pnand %p114, %p115
      %p117 = pneg %p116
      // Predicated region
      $region9: #{tpu_custom_call.1} parent=5 // pred_check
        _
      $region10: #{tpu_custom_call.1} parent=5 // pred_check_branch
        %119 = sbr.rel (%p116) target = $region12
      $region11: #{tpu_custom_call.1} parent=5 // pred_region
        %s120 = ssub.s32 %s12, 1
        // Predicated region
        $region13: #{tpu_custom_call.1} parent=11 // pred_check
          %p121 = pneg %p59
        $region14: #{tpu_custom_call.1} parent=11 // pred_check_branch
          %123 = sbr.rel (%p121) target = $region16
        $region15: #{tpu_custom_call.1} parent=11 // pred_region
          _
        $region16: #{tpu_custom_call.1} parent=11 // pred_fallthru
          _
        // Predicated region
        $region17: #{tpu_custom_call.1} parent=11 // pred_check
          %p124 = pneg %p80
        $region18: #{tpu_custom_call.1} parent=11 // pred_check_branch
          %126 = sbr.rel (%p124) target = $region20
        $region19: #{tpu_custom_call.1} parent=11 // pred_region
          _
        $region20: #{tpu_custom_call.1} parent=11 // pred_fallthru
          _
      $region12: #{tpu_custom_call.1} parent=5 // pred_fallthru
        _
      %p127 = scmp.lt.s32.totalorder %s12, 2
      // Predicated region
      $region21: #{tpu_custom_call.1} parent=5 // pred_check
        %p128 = pneg %p127
      $region22: #{tpu_custom_call.1} parent=5 // pred_check_branch
        %130 = sbr.rel (%p128) target = $region24
      $region23: #{tpu_custom_call.1} parent=5 // pred_region
        // Predicated region
        $region25: #{tpu_custom_call.1} parent=23 // pred_check
          %p131 = pneg %p32
        $region26: #{tpu_custom_call.1} parent=23 // pred_check_branch
          %133 = sbr.rel (%p131) target = $region28
        $region27: #{tpu_custom_call.1} parent=23 // pred_region
          %p134 = scmp.lt.s32.totalorder %s12, 1
          %s135 = scalar_select %p134, %s12, 1
          %s136 = smul.addr %s135, 54
          %s137 = smul.addr %s136, 8
          %s138 = scalar_lea.vmem %s0, %s137
        $region28: #{tpu_custom_call.1} parent=23 // pred_fallthru
          _
      $region24: #{tpu_custom_call.1} parent=5 // pred_fallthru
        _
      %p139 = scmp.le.s32.totalorder 1, %s12
      %p140 = scmp.lt.s32.totalorder %s12, 3
      %p141 = pnand %p139, %p140
      %p142 = pneg %p141
      // Predicated region
      $region29: #{tpu_custom_call.1} parent=5 // pred_check
        _
      $region30: #{tpu_custom_call.1} parent=5 // pred_check_branch
        %144 = sbr.rel (%p141) target = $region32
      $region31: #{tpu_custom_call.1} parent=5 // pred_region
        %s145 = ssub.s32 %s12, 1
        %p146 = scmp.lt.s32.totalorder %s17, 1
        %s147 = scalar_select %p146, %s17, 1
        %s148 = smul.addr %s147, 54
        %s149 = smul.addr %s148, 8
        %s150 = scalar_lea.vmem %s0, %s149
        %p151 = pneg %p38
        %p152 = pneg %p35
        %p153 = pneg %p59
        %p154 = pneg %p56
        %p155 = pneg %p80
        %p156 = pneg %p77
        %p157 = pneg %p106
        %p158 = pneg %p103
        %s159 = sand.u32 %s93, 1
        %s160 = scalar_lea.sflag [#allocation3], %s159
        %s161 = sand.u32 %s93, 1
        %s162 = smul.addr %s161, 256
        %s163 = scalar_lea.vmem [#allocation2], %s162
        %p164 = scmp.lt.s32.totalorder %s17, 1
        %s165 = scalar_select %p164, %s17, 1
        %s166 = smul.addr %s165, 54
        %s167 = smul.addr %s166, 8
        %s168 = scalar_lea.vmem %s0, %s167
        %v170 = vld [vmem:[%s168] sm:$0xff]
        %v171 = vld [vmem:[%s168 + $0x8] sm:$0xff]
        %v172 = vld [vmem:[%s168 + $0x10] sm:$0x3]
        %v173 = vld [vmem:[%s168 + $0x18] sm:$0xff]
        %v174 = vld [vmem:[%s168 + $0x20] sm:$0xff]
        %v175 = vld [vmem:[%s168 + $0x28] sm:$0x3]
        %v176 = vld [vmem:[%s168 + $0x30] sm:$0xff]
        %v177 = vld [vmem:[%s168 + $0x38] sm:$0xff]
        %v178 = vld [vmem:[%s168 + $0x40] sm:$0x3]
        %v179 = vld [vmem:[%s168 + $0x48] sm:$0xff]
        %v180 = vld [vmem:[%s168 + $0x50] sm:$0xff]
        %v181 = vld [vmem:[%s168 + $0x58] sm:$0x3]
        %v182 = vld [vmem:[%s168 + $0x60] sm:$0xff]
        %v183 = vld [vmem:[%s168 + $0x68] sm:$0xff]
        %v184 = vld [vmem:[%s168 + $0x70] sm:$0x3]
        %v185 = vld [vmem:[%s168 + $0x78] sm:$0xff]
        %v186 = vld [vmem:[%s168 + $0x80] sm:$0xff]
        %v187 = vld [vmem:[%s168 + $0x88] sm:$0x3]
        %v188 = vld [vmem:[%s168 + $0x90] sm:$0xff]
        %v189 = vld [vmem:[%s168 + $0x98] sm:$0xff]
        %v190 = vld [vmem:[%s168 + $0xa0] sm:$0x3]
        %v191 = vld [vmem:[%s168 + $0xa8] sm:$0xff]
        %v192 = vld [vmem:[%s168 + $0xb0] sm:$0xff]
        %v193 = vld [vmem:[%s168 + $0xb8] sm:$0x3]
        %v194 = vld [vmem:[%s168 + $0xc0] sm:$0xff]
        %v195 = vld [vmem:[%s168 + $0xc8] sm:$0xff]
        %v196 = vld [vmem:[%s168 + $0xd0] sm:$0x3]
        %v197 = vld [vmem:[%s168 + $0xd8] sm:$0xff]
        %v198 = vld [vmem:[%s168 + $0xe0] sm:$0xff]
        %v199 = vld [vmem:[%s168 + $0xe8] sm:$0x3]
        %v200 = vld [vmem:[%s168 + $0xf0] sm:$0xff]
        %v201 = vld [vmem:[%s168 + $0xf8] sm:$0xff]
        %v202 = vld [vmem:[%s168 + $0x100] sm:$0x3]
        %v203 = vld [vmem:[%s168 + $0x108] sm:$0xff]
        %v204 = vld [vmem:[%s168 + $0x110] sm:$0xff]
        %v205 = vld [vmem:[%s168 + $0x118] sm:$0x3]
        %v206 = vld [vmem:[%s168 + $0x120] sm:$0xff]
        %v207 = vld [vmem:[%s168 + $0x128] sm:$0xff]
        %v208 = vld [vmem:[%s168 + $0x130] sm:$0x3]
        %v209 = vld [vmem:[%s168 + $0x138] sm:$0xff]
        %v210 = vld [vmem:[%s168 + $0x140] sm:$0xff]
        %v211 = vld [vmem:[%s168 + $0x148] sm:$0x3]
        %v212 = vld [vmem:[%s168 + $0x150] sm:$0xff]
        %v213 = vld [vmem:[%s168 + $0x158] sm:$0xff]
        %v214 = vld [vmem:[%s168 + $0x160] sm:$0x3]
        %v215 = vld [vmem:[%s168 + $0x168] sm:$0xff]
        %v216 = vld [vmem:[%s168 + $0x170] sm:$0xff]
        %v217 = vld [vmem:[%s168 + $0x178] sm:$0x3]
        %v218 = vld [vmem:[%s168 + $0x180] sm:$0xff]
        %v219 = vld [vmem:[%s168 + $0x188] sm:$0xff]
        %v220 = vld [vmem:[%s168 + $0x190] sm:$0x3]
        %v221 = vld [vmem:[%s168 + $0x198] sm:$0xff]
        %v222 = vld [vmem:[%s168 + $0x1a0] sm:$0xff]
        %v223 = vld [vmem:[%s168 + $0x1a8] sm:$0x3]
        %v224 = vpack.c.bf16 %v171, %v170
        %v225 = vpack.c.bf16 %v174, %v173
        %v226 = vpack.c.bf16 %v177, %v176
        %v227 = vpack.c.bf16 %v180, %v179
        %v228 = vpack.c.bf16 %v183, %v182
        %v229 = vpack.c.bf16 %v186, %v185
        %v230 = vpack.c.bf16 %v189, %v188
        %v231 = vpack.c.bf16 %v192, %v191
        %v232 = vpack.c.bf16 %v195, %v194
        %v233 = vpack.c.bf16 %v198, %v197
        %v234 = vpack.c.bf16 %v201, %v200
        %v235 = vpack.c.bf16 %v204, %v203
        %v236 = vpack.c.bf16 %v207, %v206
        %v237 = vpack.c.bf16 %v210, %v209
        %v238 = vpack.c.bf16 %v213, %v212
        %v239 = vpack.c.bf16 %v216, %v215
        %v240 = vld [vmem:[%s1] sm:$0x3]
        %vm289 = vcmask 1046528
        %v290 = vrot.slane %v170, 1
        %v291 = vrot.slane %v171, 1
        %v292 = vsel %vm289, %v290, %v291
        %v293 = vrot.slane %v172, 1
        %v294 = vsel %vm289, %v291, %v293
        %v295 = vrot.slane %v173, 1
        %v296 = vrot.slane %v174, 1
        %v297 = vsel %vm289, %v295, %v296
        %v298 = vrot.slane %v175, 1
        %v299 = vsel %vm289, %v296, %v298
        %v300 = vrot.slane %v176, 1
        %v301 = vrot.slane %v177, 1
        %v302 = vsel %vm289, %v300, %v301
        %v303 = vrot.slane %v178, 1
        %v304 = vsel %vm289, %v301, %v303
        %v305 = vrot.slane %v179, 1
        %v306 = vrot.slane %v180, 1
        %v307 = vsel %vm289, %v305, %v306
        %v308 = vrot.slane %v181, 1
        %v309 = vsel %vm289, %v306, %v308
        %v310 = vrot.slane %v182, 1
        %v311 = vrot.slane %v183, 1
        %v312 = vsel %vm289, %v310, %v311
        %v313 = vrot.slane %v184, 1
        %v314 = vsel %vm289, %v311, %v313
        %v315 = vrot.slane %v185, 1
        %v316 = vrot.slane %v186, 1
        %v317 = vsel %vm289, %v315, %v316
        %v318 = vrot.slane %v187, 1
        %v319 = vsel %vm289, %v316, %v318
        %v320 = vrot.slane %v188, 1
        %v321 = vrot.slane %v189, 1
        %v322 = vsel %vm289, %v320, %v321
        %v323 = vrot.slane %v190, 1
        %v324 = vsel %vm289, %v321, %v323
        %v325 = vrot.slane %v191, 1
        %v326 = vrot.slane %v192, 1
        %v327 = vsel %vm289, %v325, %v326
        %v328 = vrot.slane %v193, 1
        %v329 = vsel %vm289, %v326, %v328
        %v330 = vrot.slane %v194, 1
        %v331 = vrot.slane %v195, 1
        %v332 = vsel %vm289, %v330, %v331
        %v333 = vrot.slane %v196, 1
        %v334 = vsel %vm289, %v331, %v333
        %v335 = vrot.slane %v197, 1
        %v336 = vrot.slane %v198, 1
        %v337 = vsel %vm289, %v335, %v336
        %v338 = vrot.slane %v199, 1
        %v339 = vsel %vm289, %v336, %v338
        %v340 = vrot.slane %v200, 1
        %v341 = vrot.slane %v201, 1
        %v342 = vsel %vm289, %v340, %v341
        %v343 = vrot.slane %v202, 1
        %v344 = vsel %vm289, %v341, %v343
        %v345 = vrot.slane %v203, 1
        %v346 = vrot.slane %v204, 1
        %v347 = vsel %vm289, %v345, %v346
        %v348 = vrot.slane %v205, 1
        %v349 = vsel %vm289, %v346, %v348
        %v350 = vrot.slane %v206, 1
        %v351 = vrot.slane %v207, 1
        %v352 = vsel %vm289, %v350, %v351
        %v353 = vrot.slane %v208, 1
        %v354 = vsel %vm289, %v351, %v353
        %v355 = vrot.slane %v209, 1
        %v356 = vrot.slane %v210, 1
        %v357 = vsel %vm289, %v355, %v356
        %v358 = vrot.slane %v211, 1
        %v359 = vsel %vm289, %v356, %v358
        %v360 = vrot.slane %v212, 1
        %v361 = vrot.slane %v213, 1
        %v362 = vsel %vm289, %v360, %v361
        %v363 = vrot.slane %v214, 1
        %v364 = vsel %vm289, %v361, %v363
        %v365 = vrot.slane %v215, 1
        %v366 = vrot.slane %v216, 1
        %v367 = vsel %vm289, %v365, %v366
        %v368 = vrot.slane %v217, 1
        %v369 = vsel %vm289, %v366, %v368
        %v402 = vpack.c.bf16 %v294, %v292
        %v403 = vpack.c.bf16 %v299, %v297
        %v404 = vpack.c.bf16 %v304, %v302
        %v405 = vpack.c.bf16 %v309, %v307
        %v406 = vpack.c.bf16 %v314, %v312
        %v407 = vpack.c.bf16 %v319, %v317
        %v408 = vpack.c.bf16 %v324, %v322
        %v409 = vpack.c.bf16 %v329, %v327
        %v410 = vpack.c.bf16 %v334, %v332
        %v411 = vpack.c.bf16 %v339, %v337
        %v412 = vpack.c.bf16 %v344, %v342
        %v413 = vpack.c.bf16 %v349, %v347
        %v414 = vpack.c.bf16 %v354, %v352
        %v415 = vpack.c.bf16 %v359, %v357
        %v416 = vpack.c.bf16 %v364, %v362
        %v417 = vpack.c.bf16 %v369, %v367
        %s418 = scalar_lea.vmem %s1, 2
        %v419 = vld [vmem:[%s418] sm:$0x3]
        %vm420 = vcmask 23552
        %v422 = vsel %vm420, %v402, 0
        %v425 = vsel %vm420, %v403, 0
        %v428 = vsel %vm420, %v404, 0
        %v431 = vsel %vm420, %v405, 0
        %v434 = vsel %vm420, %v406, 0
        %v437 = vsel %vm420, %v407, 0
        %v440 = vsel %vm420, %v408, 0
        %v443 = vsel %vm420, %v409, 0
        %v446 = vsel %vm420, %v410, 0
        %v449 = vsel %vm420, %v411, 0
        %v452 = vsel %vm420, %v412, 0
        %v455 = vsel %vm420, %v413, 0
        %v458 = vsel %vm420, %v414, 0
        %v461 = vsel %vm420, %v415, 0
        %v464 = vsel %vm420, %v416, 0
        %v467 = vsel %vm420, %v417, 0
        %vm469 = vcmask 1040384
        %vm470 = vcmask 1041408
        %v471 = vsel %vm469, 4294967295, 65535
        %v472 = vsel %vm470, %v471, 0
        %v474 = vand.u32 %v419, %v472
        %476 = vmatprep.subr.bf16.mxu0 0
        %477 = vmatpush1.bf16.msra.mxu0 %v474
        %478 = vmatprep.subr.bf16.mxu0 0
        %479 = vmatpush1.bf16.msra.mxu0 0
        %480 = vmatprep.subr.bf16.mxu0 0
        %481 = vmatpush1.bf16.msra.mxu0 0
        %482 = vmatprep.subr.bf16.mxu0 0
        %483 = vmatpush1.bf16.msra.mxu0 0
        %484 = vmatprep.subr.bf16.mxu0 0
        %485 = vmatpush1.bf16.msra.mxu0 0
        %486 = vmatprep.subr.bf16.mxu0 0
        %487 = vmatpush1.bf16.msra.mxu0 0
        %488 = vmatprep.subr.bf16.mxu0 0
        %489 = vmatpush1.bf16.msra.mxu0 0
        %490 = vmatprep.subr.bf16.mxu0 0
        %491 = vmatpush1.bf16.msra.mxu0 0
        %492 = vmatprep.subr.bf16.mxu0 0
        %493 = vmatpush1.bf16.msra.mxu0 0
        %494 = vmatprep.subr.bf16.mxu0 0
        %495 = vmatpush1.bf16.msra.mxu0 0
        %496 = vmatprep.subr.bf16.mxu0 0
        %497 = vmatpush1.bf16.msra.mxu0 0
        %498 = vmatprep.subr.bf16.mxu0 0
        %499 = vmatpush1.bf16.msra.mxu0 0
        %500 = vmatprep.subr.bf16.mxu0 0
        %501 = vmatpush1.bf16.msra.mxu0 0
        %502 = vmatprep.subr.bf16.mxu0 0
        %503 = vmatpush1.bf16.msra.mxu0 0
        %504 = vmatprep.subr.bf16.mxu0 0
        %505 = vmatpush1.bf16.msra.mxu0 0
        %506 = vmatprep.subr.bf16.mxu0 0
        %507 = vmatpush1.bf16.msra.mxu0 0
        %508 = vmatprep.mubr.bf16.mxu0 0
        %509 = vmatmul.mubr.bf16.gmra.mrb[0].mxu0 %v422
        %v510 = vpop.f32.mrb[0].mxu0
        %v511 = vadd.f32 0.0, %v510
        %v512 = vpop.f32.mrb[0].mxu0
        %v513 = vpop.f32.mrb[0].mxu0
        %v514 = vadd.f32 0.0, %v513
        %v515 = vpop.f32.mrb[0].mxu0
        %516 = vmatprep.mubr.bf16.mxu0 0
        %517 = vmatmul.mubr.bf16.gmra.mrb[0].mxu0 %v425
        %v518 = vpop.f32.mrb[0].mxu0
        %v519 = vadd.f32 0.0, %v518
        %v520 = vpop.f32.mrb[0].mxu0
        %v521 = vpop.f32.mrb[0].mxu0
        %v522 = vadd.f32 0.0, %v521
        %v523 = vpop.f32.mrb[0].mxu0
        %524 = vmatprep.mubr.bf16.mxu0 0
        %525 = vmatmul.mubr.bf16.gmra.mrb[0].mxu0 %v428
        %v526 = vpop.f32.mrb[0].mxu0
        %v527 = vadd.f32 0.0, %v526
        %v528 = vpop.f32.mrb[0].mxu0
        %v529 = vpop.f32.mrb[0].mxu0
        %v530 = vadd.f32 0.0, %v529
        %v531 = vpop.f32.mrb[0].mxu0
        %532 = vmatprep.mubr.bf16.mxu0 0
        %533 = vmatmul.mubr.bf16.gmra.mrb[0].mxu0 %v431
        %v534 = vpop.f32.mrb[0].mxu0
        %v535 = vadd.f32 0.0, %v534
        %v536 = vpop.f32.mrb[0].mxu0
        %v537 = vpop.f32.mrb[0].mxu0
        %v538 = vadd.f32 0.0, %v537
        %v539 = vpop.f32.mrb[0].mxu0
        %540 = vmatprep.mubr.bf16.mxu0 0
        %541 = vmatmul.mubr.bf16.gmra.mrb[0].mxu0 %v434
        %v542 = vpop.f32.mrb[0].mxu0
        %v543 = vadd.f32 0.0, %v542
        %v544 = vpop.f32.mrb[0].mxu0
        %v545 = vpop.f32.mrb[0].mxu0
        %v546 = vadd.f32 0.0, %v545
        %v547 = vpop.f32.mrb[0].mxu0
        %548 = vmatprep.mubr.bf16.mxu0 0
        %549 = vmatmul.mubr.bf16.gmra.mrb[0].mxu0 %v437
        %v550 = vpop.f32.mrb[0].mxu0
        %v551 = vadd.f32 0.0, %v550
        %v552 = vpop.f32.mrb[0].mxu0
        %v553 = vpop.f32.mrb[0].mxu0
        %v554 = vadd.f32 0.0, %v553
        %v555 = vpop.f32.mrb[0].mxu0
        %556 = vmatprep.mubr.bf16.mxu0 0
        %557 = vmatmul.mubr.bf16.gmra.mrb[0].mxu0 %v440
        %v558 = vpop.f32.mrb[0].mxu0
        %v559 = vadd.f32 0.0, %v558
        %v560 = vpop.f32.mrb[0].mxu0
        %v561 = vpop.f32.mrb[0].mxu0
        %v562 = vadd.f32 0.0, %v561
        %v563 = vpop.f32.mrb[0].mxu0
        %564 = vmatprep.mubr.bf16.mxu0 0
        %565 = vmatmul.mubr.bf16.gmra.mrb[0].mxu0 %v443
        %v566 = vpop.f32.mrb[0].mxu0
        %v567 = vadd.f32 0.0, %v566
        %v568 = vpop.f32.mrb[0].mxu0
        %v569 = vpop.f32.mrb[0].mxu0
        %v570 = vadd.f32 0.0, %v569
        %v571 = vpop.f32.mrb[0].mxu0
        %572 = vmatprep.mubr.bf16.mxu0 0
        %573 = vmatmul.mubr.bf16.gmra.mrb[0].mxu0 %v446
        %v574 = vpop.f32.mrb[0].mxu0
        %v575 = vadd.f32 0.0, %v574
        %v576 = vpop.f32.mrb[0].mxu0
        %v577 = vpop.f32.mrb[0].mxu0
        %v578 = vadd.f32 0.0, %v577
        %v579 = vpop.f32.mrb[0].mxu0
        %580 = vmatprep.mubr.bf16.mxu0 0
        %581 = vmatmul.mubr.bf16.gmra.mrb[0].mxu0 %v449
        %v582 = vpop.f32.mrb[0].mxu0
        %v583 = vadd.f32 0.0, %v582
        %v584 = vpop.f32.mrb[0].mxu0
        %v585 = vpop.f32.mrb[0].mxu0
        %v586 = vadd.f32 0.0, %v585
        %v587 = vpop.f32.mrb[0].mxu0
        %588 = vmatprep.mubr.bf16.mxu0 0
        %589 = vmatmul.mubr.bf16.gmra.mrb[0].mxu0 %v452
        %v590 = vpop.f32.mrb[0].mxu0
        %v591 = vadd.f32 0.0, %v590
        %v592 = vpop.f32.mrb[0].mxu0
        %v593 = vpop.f32.mrb[0].mxu0
        %v594 = vadd.f32 0.0, %v593
        %v595 = vpop.f32.mrb[0].mxu0
        %596 = vmatprep.mubr.bf16.mxu0 0
        %597 = vmatmul.mubr.bf16.gmra.mrb[0].mxu0 %v455
        %v598 = vpop.f32.mrb[0].mxu0
        %v599 = vadd.f32 0.0, %v598
        %v600 = vpop.f32.mrb[0].mxu0
        %v601 = vpop.f32.mrb[0].mxu0
        %v602 = vadd.f32 0.0, %v601
        %v603 = vpop.f32.mrb[0].mxu0
        %604 = vmatprep.mubr.bf16.mxu0 0
        %605 = vmatmul.mubr.bf16.gmra.mrb[0].mxu0 %v458
        %v606 = vpop.f32.mrb[0].mxu0
        %v607 = vadd.f32 0.0, %v606
        %v608 = vpop.f32.mrb[0].mxu0
        %v609 = vpop.f32.mrb[0].mxu0
        %v610 = vadd.f32 0.0, %v609
        %v611 = vpop.f32.mrb[0].mxu0
        %612 = vmatprep.mubr.bf16.mxu0 0
        %613 = vmatmul.mubr.bf16.gmra.mrb[0].mxu0 %v461
        %v614 = vpop.f32.mrb[0].mxu0
        %v615 = vadd.f32 0.0, %v614
        %v616 = vpop.f32.mrb[0].mxu0
        %v617 = vpop.f32.mrb[0].mxu0
        %v618 = vadd.f32 0.0, %v617
        %v619 = vpop.f32.mrb[0].mxu0
        %620 = vmatprep.mubr.bf16.mxu0 0
        %621 = vmatmul.mubr.bf16.gmra.mrb[0].mxu0 %v464
        %v622 = vpop.f32.mrb[0].mxu0
        %v623 = vadd.f32 0.0, %v622
        %v624 = vpop.f32.mrb[0].mxu0
        %v625 = vpop.f32.mrb[0].mxu0
        %v626 = vadd.f32 0.0, %v625
        %v627 = vpop.f32.mrb[0].mxu0
        %628 = vmatprep.mubr.bf16.mxu0 0
        %629 = vmatmul.mubr.bf16.gmra.mrb[0].mxu0 %v467
        %v630 = vpop.f32.mrb[0].mxu0
        %v631 = vadd.f32 0.0, %v630
        %v632 = vpop.f32.mrb[0].mxu0
        %v633 = vpop.f32.mrb[0].mxu0
        %v634 = vadd.f32 0.0, %v633
        %v635 = vpop.f32.mrb[0].mxu0
        %636 = vdwg.mxu0
        %v638 = vsel %vm420, %v224, 0
        %v641 = vsel %vm420, %v225, 0
        %v644 = vsel %vm420, %v226, 0
        %v647 = vsel %vm420, %v227, 0
        %v650 = vsel %vm420, %v228, 0
        %v653 = vsel %vm420, %v229, 0
        %v656 = vsel %vm420, %v230, 0
        %v659 = vsel %vm420, %v231, 0
        %v662 = vsel %vm420, %v232, 0
        %v665 = vsel %vm420, %v233, 0
        %v668 = vsel %vm420, %v234, 0
        %v671 = vsel %vm420, %v235, 0
        %v674 = vsel %vm420, %v236, 0
        %v677 = vsel %vm420, %v237, 0
        %v680 = vsel %vm420, %v238, 0
        %v683 = vsel %vm420, %v239, 0
        %v686 = vand.u32 %v240, %v472
        %688 = vmatprep.subr.bf16.mxu0 0
        %689 = vmatpush1.bf16.msra.mxu0 %v686
        %690 = vmatprep.subr.bf16.mxu0 0
        %691 = vmatpush1.bf16.msra.mxu0 0
        %692 = vmatprep.subr.bf16.mxu0 0
        %693 = vmatpush1.bf16.msra.mxu0 0
        %694 = vmatprep.subr.bf16.mxu0 0
        %695 = vmatpush1.bf16.msra.mxu0 0
        %696 = vmatprep.subr.bf16.mxu0 0
        %697 = vmatpush1.bf16.msra.mxu0 0
        %698 = vmatprep.subr.bf16.mxu0 0
        %699 = vmatpush1.bf16.msra.mxu0 0
        %700 = vmatprep.subr.bf16.mxu0 0
        %701 = vmatpush1.bf16.msra.mxu0 0
        %702 = vmatprep.subr.bf16.mxu0 0
        %703 = vmatpush1.bf16.msra.mxu0 0
        %704 = vmatprep.subr.bf16.mxu0 0
        %705 = vmatpush1.bf16.msra.mxu0 0
        %706 = vmatprep.subr.bf16.mxu0 0
        %707 = vmatpush1.bf16.msra.mxu0 0
        %708 = vmatprep.subr.bf16.mxu0 0
        %709 = vmatpush1.bf16.msra.mxu0 0
        %710 = vmatprep.subr.bf16.mxu0 0
        %711 = vmatpush1.bf16.msra.mxu0 0
        %712 = vmatprep.subr.bf16.mxu0 0
        %713 = vmatpush1.bf16.msra.mxu0 0
        %714 = vmatprep.subr.bf16.mxu0 0
        %715 = vmatpush1.bf16.msra.mxu0 0
        %716 = vmatprep.subr.bf16.mxu0 0
        %717 = vmatpush1.bf16.msra.mxu0 0
        %718 = vmatprep.subr.bf16.mxu0 0
        %719 = vmatpush1.bf16.msra.mxu0 0
        %720 = vmatprep.mubr.bf16.mxu0 0
        %721 = vmatmul.mubr.bf16.gmra.mrb[0].mxu0 %v638
        %v722 = vpop.f32.mrb[0].mxu0
        %v723 = vadd.f32 %v511, %v722
        %v724 = vpop.f32.mrb[0].mxu0
        %v725 = vpop.f32.mrb[0].mxu0
        %v726 = vadd.f32 %v514, %v725
        %v727 = vpop.f32.mrb[0].mxu0
        %728 = vmatprep.mubr.bf16.mxu0 0
        %729 = vmatmul.mubr.bf16.gmra.mrb[0].mxu0 %v641
        %v730 = vpop.f32.mrb[0].mxu0
        %v731 = vadd.f32 %v519, %v730
        %v732 = vpop.f32.mrb[0].mxu0
        %v733 = vpop.f32.mrb[0].mxu0
        %v734 = vadd.f32 %v522, %v733
        %v735 = vpop.f32.mrb[0].mxu0
        %736 = vmatprep.mubr.bf16.mxu0 0
        %737 = vmatmul.mubr.bf16.gmra.mrb[0].mxu0 %v644
        %v738 = vpop.f32.mrb[0].mxu0
        %v739 = vadd.f32 %v527, %v738
        %v740 = vpop.f32.mrb[0].mxu0
        %v741 = vpop.f32.mrb[0].mxu0
        %v742 = vadd.f32 %v530, %v741
        %v743 = vpop.f32.mrb[0].mxu0
        %744 = vmatprep.mubr.bf16.mxu0 0
        %745 = vmatmul.mubr.bf16.gmra.mrb[0].mxu0 %v647
        %v746 = vpop.f32.mrb[0].mxu0
        %v747 = vadd.f32 %v535, %v746
        %v748 = vpop.f32.mrb[0].mxu0
        %v749 = vpop.f32.mrb[0].mxu0
        %v750 = vadd.f32 %v538, %v749
        %v751 = vpop.f32.mrb[0].mxu0
        %752 = vmatprep.mubr.bf16.mxu0 0
        %753 = vmatmul.mubr.bf16.gmra.mrb[0].mxu0 %v650
        %v754 = vpop.f32.mrb[0].mxu0
        %v755 = vadd.f32 %v543, %v754
        %v756 = vpop.f32.mrb[0].mxu0
        %v757 = vpop.f32.mrb[0].mxu0
        %v758 = vadd.f32 %v546, %v757
        %v759 = vpop.f32.mrb[0].mxu0
        %760 = vmatprep.mubr.bf16.mxu0 0
        %761 = vmatmul.mubr.bf16.gmra.mrb[0].mxu0 %v653
        %v762 = vpop.f32.mrb[0].mxu0
        %v763 = vadd.f32 %v551, %v762
        %v764 = vpop.f32.mrb[0].mxu0
        %v765 = vpop.f32.mrb[0].mxu0
        %v766 = vadd.f32 %v554, %v765
        %v767 = vpop.f32.mrb[0].mxu0
        %768 = vmatprep.mubr.bf16.mxu0 0
        %769 = vmatmul.mubr.bf16.gmra.mrb[0].mxu0 %v656
        %v770 = vpop.f32.mrb[0].mxu0
        %v771 = vadd.f32 %v559, %v770
        %v772 = vpop.f32.mrb[0].mxu0
        %v773 = vpop.f32.mrb[0].mxu0
        %v774 = vadd.f32 %v562, %v773
        %v775 = vpop.f32.mrb[0].mxu0
        %776 = vmatprep.mubr.bf16.mxu0 0
        %777 = vmatmul.mubr.bf16.gmra.mrb[0].mxu0 %v659
        %v778 = vpop.f32.mrb[0].mxu0
        %v779 = vadd.f32 %v567, %v778
        %v780 = vpop.f32.mrb[0].mxu0
        %v781 = vpop.f32.mrb[0].mxu0
        %v782 = vadd.f32 %v570, %v781
        %v783 = vpop.f32.mrb[0].mxu0
        %784 = vmatprep.mubr.bf16.mxu0 0
        %785 = vmatmul.mubr.bf16.gmra.mrb[0].mxu0 %v662
        %v786 = vpop.f32.mrb[0].mxu0
        %v787 = vadd.f32 %v575, %v786
        %v788 = vpop.f32.mrb[0].mxu0
        %v789 = vpop.f32.mrb[0].mxu0
        %v790 = vadd.f32 %v578, %v789
        %v791 = vpop.f32.mrb[0].mxu0
        %792 = vmatprep.mubr.bf16.mxu0 0
        %793 = vmatmul.mubr.bf16.gmra.mrb[0].mxu0 %v665
        %v794 = vpop.f32.mrb[0].mxu0
        %v795 = vadd.f32 %v583, %v794
        %v796 = vpop.f32.mrb[0].mxu0
        %v797 = vpop.f32.mrb[0].mxu0
        %v798 = vadd.f32 %v586, %v797
        %v799 = vpop.f32.mrb[0].mxu0
        %800 = vmatprep.mubr.bf16.mxu0 0
        %801 = vmatmul.mubr.bf16.gmra.mrb[0].mxu0 %v668
        %v802 = vpop.f32.mrb[0].mxu0
        %v803 = vadd.f32 %v591, %v802
        %v804 = vpop.f32.mrb[0].mxu0
        %v805 = vpop.f32.mrb[0].mxu0
        %v806 = vadd.f32 %v594, %v805
        %v807 = vpop.f32.mrb[0].mxu0
        %808 = vmatprep.mubr.bf16.mxu0 0
        %809 = vmatmul.mubr.bf16.gmra.mrb[0].mxu0 %v671
        %v810 = vpop.f32.mrb[0].mxu0
        %v811 = vadd.f32 %v599, %v810
        %v812 = vpop.f32.mrb[0].mxu0
        %v813 = vpop.f32.mrb[0].mxu0
        %v814 = vadd.f32 %v602, %v813
        %v815 = vpop.f32.mrb[0].mxu0
        %816 = vmatprep.mubr.bf16.mxu0 0
        %817 = vmatmul.mubr.bf16.gmra.mrb[0].mxu0 %v674
        %v818 = vpop.f32.mrb[0].mxu0
        %v819 = vadd.f32 %v607, %v818
        %v820 = vpop.f32.mrb[0].mxu0
        %v821 = vpop.f32.mrb[0].mxu0
        %v822 = vadd.f32 %v610, %v821
        %v823 = vpop.f32.mrb[0].mxu0
        %824 = vmatprep.mubr.bf16.mxu0 0
        %825 = vmatmul.mubr.bf16.gmra.mrb[0].mxu0 %v677
        %v826 = vpop.f32.mrb[0].mxu0
        %v827 = vadd.f32 %v615, %v826
        %v828 = vpop.f32.mrb[0].mxu0
        %v829 = vpop.f32.mrb[0].mxu0
        %v830 = vadd.f32 %v618, %v829
        %v831 = vpop.f32.mrb[0].mxu0
        %832 = vmatprep.mubr.bf16.mxu0 0
        %833 = vmatmul.mubr.bf16.gmra.mrb[0].mxu0 %v680
        %v834 = vpop.f32.mrb[0].mxu0
        %v835 = vadd.f32 %v623, %v834
        %v836 = vpop.f32.mrb[0].mxu0
        %v837 = vpop.f32.mrb[0].mxu0
        %v838 = vadd.f32 %v626, %v837
        %v839 = vpop.f32.mrb[0].mxu0
        %840 = vmatprep.mubr.bf16.mxu0 0
        %841 = vmatmul.mubr.bf16.gmra.mrb[0].mxu0 %v683
        %v842 = vpop.f32.mrb[0].mxu0
        %v843 = vadd.f32 %v631, %v842
        %v844 = vpop.f32.mrb[0].mxu0
        %v845 = vpop.f32.mrb[0].mxu0
        %v846 = vadd.f32 %v634, %v845
        %v847 = vpop.f32.mrb[0].mxu0
        %848 = vdwg.mxu0
        %vm849 = vcmask 1045504
        %v850 = vrot.slane %v170, 2
        %v851 = vrot.slane %v171, 2
        %v852 = vsel %vm849, %v850, %v851
        %v853 = vrot.slane %v172, 2
        %v854 = vsel %vm849, %v851, %v853
        %v855 = vrot.slane %v173, 2
        %v856 = vrot.slane %v174, 2
        %v857 = vsel %vm849, %v855, %v856
        %v858 = vrot.slane %v175, 2
        %v859 = vsel %vm849, %v856, %v858
        %v860 = vrot.slane %v176, 2
        %v861 = vrot.slane %v177, 2
        %v862 = vsel %vm849, %v860, %v861
        %v863 = vrot.slane %v178, 2
        %v864 = vsel %vm849, %v861, %v863
        %v865 = vrot.slane %v179, 2
        %v866 = vrot.slane %v180, 2
        %v867 = vsel %vm849, %v865, %v866
        %v868 = vrot.slane %v181, 2
        %v869 = vsel %vm849, %v866, %v868
        %v870 = vrot.slane %v182, 2
        %v871 = vrot.slane %v183, 2
        %v872 = vsel %vm849, %v870, %v871
        %v873 = vrot.slane %v184, 2
        %v874 = vsel %vm849, %v871, %v873
        %v875 = vrot.slane %v185, 2
        %v876 = vrot.slane %v186, 2
        %v877 = vsel %vm849, %v875, %v876
        %v878 = vrot.slane %v187, 2
        %v879 = vsel %vm849, %v876, %v878
        %v880 = vrot.slane %v188, 2
        %v881 = vrot.slane %v189, 2
        %v882 = vsel %vm849, %v880, %v881
        %v883 = vrot.slane %v190, 2
        %v884 = vsel %vm849, %v881, %v883
        %v885 = vrot.slane %v191, 2
        %v886 = vrot.slane %v192, 2
        %v887 = vsel %vm849, %v885, %v886
        %v888 = vrot.slane %v193, 2
        %v889 = vsel %vm849, %v886, %v888
        %v890 = vrot.slane %v194, 2
        %v891 = vrot.slane %v195, 2
        %v892 = vsel %vm849, %v890, %v891
        %v893 = vrot.slane %v196, 2
        %v894 = vsel %vm849, %v891, %v893
        %v895 = vrot.slane %v197, 2
        %v896 = vrot.slane %v198, 2
        %v897 = vsel %vm849, %v895, %v896
        %v898 = vrot.slane %v199, 2
        %v899 = vsel %vm849, %v896, %v898
        %v900 = vrot.slane %v200, 2
        %v901 = vrot.slane %v201, 2
        %v902 = vsel %vm849, %v900, %v901
        %v903 = vrot.slane %v202, 2
        %v904 = vsel %vm849, %v901, %v903
        %v905 = vrot.slane %v203, 2
        %v906 = vrot.slane %v204, 2
        %v907 = vsel %vm849, %v905, %v906
        %v908 = vrot.slane %v205, 2
        %v909 = vsel %vm849, %v906, %v908
        %v910 = vrot.slane %v206, 2
        %v911 = vrot.slane %v207, 2
        %v912 = vsel %vm849, %v910, %v911
        %v913 = vrot.slane %v208, 2
        %v914 = vsel %vm849, %v911, %v913
        %v915 = vrot.slane %v209, 2
        %v916 = vrot.slane %v210, 2
        %v917 = vsel %vm849, %v915, %v916
        %v918 = vrot.slane %v211, 2
        %v919 = vsel %vm849, %v916, %v918
        %v920 = vrot.slane %v212, 2
        %v921 = vrot.slane %v213, 2
        %v922 = vsel %vm849, %v920, %v921
        %v923 = vrot.slane %v214, 2
        %v924 = vsel %vm849, %v921, %v923
        %v925 = vrot.slane %v215, 2
        %v926 = vrot.slane %v216, 2
        %v927 = vsel %vm849, %v925, %v926
        %v928 = vrot.slane %v217, 2
        %v929 = vsel %vm849, %v926, %v928
        %v962 = vpack.c.bf16 %v854, %v852
        %v963 = vpack.c.bf16 %v859, %v857
        %v964 = vpack.c.bf16 %v864, %v862
        %v965 = vpack.c.bf16 %v869, %v867
        %v966 = vpack.c.bf16 %v874, %v872
        %v967 = vpack.c.bf16 %v879, %v877
        %v968 = vpack.c.bf16 %v884, %v882
        %v969 = vpack.c.bf16 %v889, %v887
        %v970 = vpack.c.bf16 %v894, %v892
        %v971 = vpack.c.bf16 %v899, %v897
        %v972 = vpack.c.bf16 %v904, %v902
        %v973 = vpack.c.bf16 %v909, %v907
        %v974 = vpack.c.bf16 %v914, %v912
        %v975 = vpack.c.bf16 %v919, %v917
        %v976 = vpack.c.bf16 %v924, %v922
        %v977 = vpack.c.bf16 %v929, %v927
        %s978 = scalar_lea.vmem %s1, 4
        %v979 = vld [vmem:[%s978] sm:$0x3]
        %v981 = vsel %vm420, %v962, 0
        %v984 = vsel %vm420, %v963, 0
        %v987 = vsel %vm420, %v964, 0
        %v990 = vsel %vm420, %v965, 0
        %v993 = vsel %vm420, %v966, 0
        %v996 = vsel %vm420, %v967, 0
        %v999 = vsel %vm420, %v968, 0
        %v1002 = vsel %vm420, %v969, 0
        %v1005 = vsel %vm420, %v970, 0
        %v1008 = vsel %vm420, %v971, 0
        %v1011 = vsel %vm420, %v972, 0
        %v1014 = vsel %vm420, %v973, 0
        %v1017 = vsel %vm420, %v974, 0
        %v1020 = vsel %vm420, %v975, 0
        %v1023 = vsel %vm420, %v976, 0
        %v1026 = vsel %vm420, %v977, 0
        %v1029 = vand.u32 %v979, %v472
        %1031 = vmatprep.subr.bf16.mxu0 0
        %1032 = vmatpush1.bf16.msra.mxu0 %v1029
        %1033 = vmatprep.subr.bf16.mxu0 0
        %1034 = vmatpush1.bf16.msra.mxu0 0
        %1035 = vmatprep.subr.bf16.mxu0 0
        %1036 = vmatpush1.bf16.msra.mxu0 0
        %1037 = vmatprep.subr.bf16.mxu0 0
        %1038 = vmatpush1.bf16.msra.mxu0 0
        %1039 = vmatprep.subr.bf16.mxu0 0
        %1040 = vmatpush1.bf16.msra.mxu0 0
        %1041 = vmatprep.subr.bf16.mxu0 0
        %1042 = vmatpush1.bf16.msra.mxu0 0
        %1043 = vmatprep.subr.bf16.mxu0 0
        %1044 = vmatpush1.bf16.msra.mxu0 0
        %1045 = vmatprep.subr.bf16.mxu0 0
        %1046 = vmatpush1.bf16.msra.mxu0 0
        %1047 = vmatprep.subr.bf16.mxu0 0
        %1048 = vmatpush1.bf16.msra.mxu0 0
        %1049 = vmatprep.subr.bf16.mxu0 0
        %1050 = vmatpush1.bf16.msra.mxu0 0
        %1051 = vmatprep.subr.bf16.mxu0 0
        %1052 = vmatpush1.bf16.msra.mxu0 0
        %1053 = vmatprep.subr.bf16.mxu0 0
        %1054 = vmatpush1.bf16.msra.mxu0 0
        %1055 = vmatprep.subr.bf16.mxu0 0
        %1056 = vmatpush1.bf16.msra.mxu0 0
        %1057 = vmatprep.subr.bf16.mxu0 0
        %1058 = vmatpush1.bf16.msra.mxu0 0
        %1059 = vmatprep.subr.bf16.mxu0 0
        %1060 = vmatpush1.bf16.msra.mxu0 0
        %1061 = vmatprep.subr.bf16.mxu0 0
        %1062 = vmatpush1.bf16.msra.mxu0 0
        %1063 = vmatprep.mubr.bf16.mxu0 0
        %1064 = vmatmul.mubr.bf16.gmra.mrb[0].mxu0 %v981
        %v1065 = vpop.f32.mrb[0].mxu0
        %v1066 = vadd.f32 0.0, %v1065
        %v1067 = vpop.f32.mrb[0].mxu0
        %v1068 = vpop.f32.mrb[0].mxu0
        %v1069 = vadd.f32 0.0, %v1068
        %v1070 = vpop.f32.mrb[0].mxu0
        %1071 = vmatprep.mubr.bf16.mxu0 0
        %1072 = vmatmul.mubr.bf16.gmra.mrb[0].mxu0 %v984
        %v1073 = vpop.f32.mrb[0].mxu0
        %v1074 = vadd.f32 0.0, %v1073
        %v1075 = vpop.f32.mrb[0].mxu0
        %v1076 = vpop.f32.mrb[0].mxu0
        %v1077 = vadd.f32 0.0, %v1076
        %v1078 = vpop.f32.mrb[0].mxu0
        %1079 = vmatprep.mubr.bf16.mxu0 0
        %1080 = vmatmul.mubr.bf16.gmra.mrb[0].mxu0 %v987
        %v1081 = vpop.f32.mrb[0].mxu0
        %v1082 = vadd.f32 0.0, %v1081
        %v1083 = vpop.f32.mrb[0].mxu0
        %v1084 = vpop.f32.mrb[0].mxu0
        %v1085 = vadd.f32 0.0, %v1084
        %v1086 = vpop.f32.mrb[0].mxu0
        %1087 = vmatprep.mubr.bf16.mxu0 0
        %1088 = vmatmul.mubr.bf16.gmra.mrb[0].mxu0 %v990
        %v1089 = vpop.f32.mrb[0].mxu0
        %v1090 = vadd.f32 0.0, %v1089
        %v1091 = vpop.f32.mrb[0].mxu0
        %v1092 = vpop.f32.mrb[0].mxu0
        %v1093 = vadd.f32 0.0, %v1092
        %v1094 = vpop.f32.mrb[0].mxu0
        %1095 = vmatprep.mubr.bf16.mxu0 0
        %1096 = vmatmul.mubr.bf16.gmra.mrb[0].mxu0 %v993
        %v1097 = vpop.f32.mrb[0].mxu0
        %v1098 = vadd.f32 0.0, %v1097
        %v1099 = vpop.f32.mrb[0].mxu0
        %v1100 = vpop.f32.mrb[0].mxu0
        %v1101 = vadd.f32 0.0, %v1100
        %v1102 = vpop.f32.mrb[0].mxu0
        %1103 = vmatprep.mubr.bf16.mxu0 0
        %1104 = vmatmul.mubr.bf16.gmra.mrb[0].mxu0 %v996
        %v1105 = vpop.f32.mrb[0].mxu0
        %v1106 = vadd.f32 0.0, %v1105
        %v1107 = vpop.f32.mrb[0].mxu0
        %v1108 = vpop.f32.mrb[0].mxu0
        %v1109 = vadd.f32 0.0, %v1108
        %v1110 = vpop.f32.mrb[0].mxu0
        %1111 = vmatprep.mubr.bf16.mxu0 0
        %1112 = vmatmul.mubr.bf16.gmra.mrb[0].mxu0 %v999
        %v1113 = vpop.f32.mrb[0].mxu0
        %v1114 = vadd.f32 0.0, %v1113
        %v1115 = vpop.f32.mrb[0].mxu0
        %v1116 = vpop.f32.mrb[0].mxu0
        %v1117 = vadd.f32 0.0, %v1116
        %v1118 = vpop.f32.mrb[0].mxu0
        %1119 = vmatprep.mubr.bf16.mxu0 0
        %1120 = vmatmul.mubr.bf16.gmra.mrb[0].mxu0 %v1002
        %v1121 = vpop.f32.mrb[0].mxu0
        %v1122 = vadd.f32 0.0, %v1121
        %v1123 = vpop.f32.mrb[0].mxu0
        %v1124 = vpop.f32.mrb[0].mxu0
        %v1125 = vadd.f32 0.0, %v1124
        %v1126 = vpop.f32.mrb[0].mxu0
        %1127 = vmatprep.mubr.bf16.mxu0 0
        %1128 = vmatmul.mubr.bf16.gmra.mrb[0].mxu0 %v1005
        %v1129 = vpop.f32.mrb[0].mxu0
        %v1130 = vadd.f32 0.0, %v1129
        %v1131 = vpop.f32.mrb[0].mxu0
        %v1132 = vpop.f32.mrb[0].mxu0
        %v1133 = vadd.f32 0.0, %v1132
        %v1134 = vpop.f32.mrb[0].mxu0
        %1135 = vmatprep.mubr.bf16.mxu0 0
        %1136 = vmatmul.mubr.bf16.gmra.mrb[0].mxu0 %v1008
        %v1137 = vpop.f32.mrb[0].mxu0
        %v1138 = vadd.f32 0.0, %v1137
        %v1139 = vpop.f32.mrb[0].mxu0
        %v1140 = vpop.f32.mrb[0].mxu0
        %v1141 = vadd.f32 0.0, %v1140
        %v1142 = vpop.f32.mrb[0].mxu0
        %1143 = vmatprep.mubr.bf16.mxu0 0
        %1144 = vmatmul.mubr.bf16.gmra.mrb[0].mxu0 %v1011
        %v1145 = vpop.f32.mrb[0].mxu0
        %v1146 = vadd.f32 0.0, %v1145
        %v1147 = vpop.f32.mrb[0].mxu0
        %v1148 = vpop.f32.mrb[0].mxu0
        %v1149 = vadd.f32 0.0, %v1148
        %v1150 = vpop.f32.mrb[0].mxu0
        %1151 = vmatprep.mubr.bf16.mxu0 0
        %1152 = vmatmul.mubr.bf16.gmra.mrb[0].mxu0 %v1014
        %v1153 = vpop.f32.mrb[0].mxu0
        %v1154 = vadd.f32 0.0, %v1153
        %v1155 = vpop.f32.mrb[0].mxu0
        %v1156 = vpop.f32.mrb[0].mxu0
        %v1157 = vadd.f32 0.0, %v1156
        %v1158 = vpop.f32.mrb[0].mxu0
        %1159 = vmatprep.mubr.bf16.mxu0 0
        %1160 = vmatmul.mubr.bf16.gmra.mrb[0].mxu0 %v1017
        %v1161 = vpop.f32.mrb[0].mxu0
        %v1162 = vadd.f32 0.0, %v1161
        %v1163 = vpop.f32.mrb[0].mxu0
        %v1164 = vpop.f32.mrb[0].mxu0
        %v1165 = vadd.f32 0.0, %v1164
        %v1166 = vpop.f32.mrb[0].mxu0
        %1167 = vmatprep.mubr.bf16.mxu0 0
        %1168 = vmatmul.mubr.bf16.gmra.mrb[0].mxu0 %v1020
        %v1169 = vpop.f32.mrb[0].mxu0
        %v1170 = vadd.f32 0.0, %v1169
        %v1171 = vpop.f32.mrb[0].mxu0
        %v1172 = vpop.f32.mrb[0].mxu0
        %v1173 = vadd.f32 0.0, %v1172
        %v1174 = vpop.f32.mrb[0].mxu0
        %1175 = vmatprep.mubr.bf16.mxu0 0
        %1176 = vmatmul.mubr.bf16.gmra.mrb[0].mxu0 %v1023
        %v1177 = vpop.f32.mrb[0].mxu0
        %v1178 = vadd.f32 0.0, %v1177
        %v1179 = vpop.f32.mrb[0].mxu0
        %v1180 = vpop.f32.mrb[0].mxu0
        %v1181 = vadd.f32 0.0, %v1180
        %v1182 = vpop.f32.mrb[0].mxu0
        %1183 = vmatprep.mubr.bf16.mxu0 0
        %1184 = vmatmul.mubr.bf16.gmra.mrb[0].mxu0 %v1026
        %v1185 = vpop.f32.mrb[0].mxu0
        %v1186 = vadd.f32 0.0, %v1185
        %v1187 = vpop.f32.mrb[0].mxu0
        %v1188 = vpop.f32.mrb[0].mxu0
        %v1189 = vadd.f32 0.0, %v1188
        %v1190 = vpop.f32.mrb[0].mxu0
        %1191 = vdwg.mxu0
        %v1192 = vadd.f32 %v723, %v1066
        %v1193 = vadd.f32 %v726, %v1069
        %v1194 = vadd.f32 %v731, %v1074
        %v1195 = vadd.f32 %v734, %v1077
        %v1196 = vadd.f32 %v739, %v1082
        %v1197 = vadd.f32 %v742, %v1085
        %v1198 = vadd.f32 %v747, %v1090
        %v1199 = vadd.f32 %v750, %v1093
        %v1200 = vadd.f32 %v755, %v1098
        %v1201 = vadd.f32 %v758, %v1101
        %v1202 = vadd.f32 %v763, %v1106
        %v1203 = vadd.f32 %v766, %v1109
        %v1204 = vadd.f32 %v771, %v1114
        %v1205 = vadd.f32 %v774, %v1117
        %v1206 = vadd.f32 %v779, %v1122
        %v1207 = vadd.f32 %v782, %v1125
        %v1208 = vadd.f32 %v787, %v1130
        %v1209 = vadd.f32 %v790, %v1133
        %v1210 = vadd.f32 %v795, %v1138
        %v1211 = vadd.f32 %v798, %v1141
        %v1212 = vadd.f32 %v803, %v1146
        %v1213 = vadd.f32 %v806, %v1149
        %v1214 = vadd.f32 %v811, %v1154
        %v1215 = vadd.f32 %v814, %v1157
        %v1216 = vadd.f32 %v819, %v1162
        %v1217 = vadd.f32 %v822, %v1165
        %v1218 = vadd.f32 %v827, %v1170
        %v1219 = vadd.f32 %v830, %v1173
        %v1220 = vadd.f32 %v835, %v1178
        %v1221 = vadd.f32 %v838, %v1181
        %v1222 = vadd.f32 %v843, %v1186
        %v1223 = vadd.f32 %v846, %v1189
        %v1224 = vpack.c.bf16 %v219, %v218
        %s1225 = scalar_lea.vmem %s1, 6
        %v1226 = vld [vmem:[%s1225] sm:$0x3]
        %v1228 = vsel %vm420, %v1224, 0
        %v1231 = vand.u32 %v1226, %v472
        %1233 = vmatprep.subr.bf16.mxu0 0
        %1234 = vmatpush1.bf16.msra.mxu0 %v1231
        %1235 = vmatprep.subr.bf16.mxu0 0
        %1236 = vmatpush1.bf16.msra.mxu0 0
        %1237 = vmatprep.subr.bf16.mxu0 0
        %1238 = vmatpush1.bf16.msra.mxu0 0
        %1239 = vmatprep.subr.bf16.mxu0 0
        %1240 = vmatpush1.bf16.msra.mxu0 0
        %1241 = vmatprep.subr.bf16.mxu0 0
        %1242 = vmatpush1.bf16.msra.mxu0 0
        %1243 = vmatprep.subr.bf16.mxu0 0
        %1244 = vmatpush1.bf16.msra.mxu0 0
        %1245 = vmatprep.subr.bf16.mxu0 0
        %1246 = vmatpush1.bf16.msra.mxu0 0
        %1247 = vmatprep.subr.bf16.mxu0 0
        %1248 = vmatpush1.bf16.msra.mxu0 0
        %1249 = vmatprep.subr.bf16.mxu0 0
        %1250 = vmatpush1.bf16.msra.mxu0 0
        %1251 = vmatprep.subr.bf16.mxu0 0
        %1252 = vmatpush1.bf16.msra.mxu0 0
        %1253 = vmatprep.subr.bf16.mxu0 0
        %1254 = vmatpush1.bf16.msra.mxu0 0
        %1255 = vmatprep.subr.bf16.mxu0 0
        %1256 = vmatpush1.bf16.msra.mxu0 0
        %1257 = vmatprep.subr.bf16.mxu0 0
        %1258 = vmatpush1.bf16.msra.mxu0 0
        %1259 = vmatprep.subr.bf16.mxu0 0
        %1260 = vmatpush1.bf16.msra.mxu0 0
        %1261 = vmatprep.subr.bf16.mxu0 0
        %1262 = vmatpush1.bf16.msra.mxu0 0
        %1263 = vmatprep.subr.bf16.mxu0 0
        %1264 = vmatpush1.bf16.msra.mxu0 0
        %1265 = vmatprep.mubr.bf16.mxu0 0
        %1266 = vmatmul.mubr.bf16.gmra.mrb[0].mxu0 %v641
        %v1267 = vpop.f32.mrb[0].mxu0
        %v1268 = vadd.f32 0.0, %v1267
        %v1269 = vpop.f32.mrb[0].mxu0
        %v1270 = vpop.f32.mrb[0].mxu0
        %v1271 = vadd.f32 0.0, %v1270
        %v1272 = vpop.f32.mrb[0].mxu0
        %1273 = vmatprep.mubr.bf16.mxu0 0
        %1274 = vmatmul.mubr.bf16.gmra.mrb[0].mxu0 %v644
        %v1275 = vpop.f32.mrb[0].mxu0
        %v1276 = vadd.f32 0.0, %v1275
        %v1277 = vpop.f32.mrb[0].mxu0
        %v1278 = vpop.f32.mrb[0].mxu0
        %v1279 = vadd.f32 0.0, %v1278
        %v1280 = vpop.f32.mrb[0].mxu0
        %1281 = vmatprep.mubr.bf16.mxu0 0
        %1282 = vmatmul.mubr.bf16.gmra.mrb[0].mxu0 %v647
        %v1283 = vpop.f32.mrb[0].mxu0
        %v1284 = vadd.f32 0.0, %v1283
        %v1285 = vpop.f32.mrb[0].mxu0
        %v1286 = vpop.f32.mrb[0].mxu0
        %v1287 = vadd.f32 0.0, %v1286
        %v1288 = vpop.f32.mrb[0].mxu0
        %1289 = vmatprep.mubr.bf16.mxu0 0
        %1290 = vmatmul.mubr.bf16.gmra.mrb[0].mxu0 %v650
        %v1291 = vpop.f32.mrb[0].mxu0
        %v1292 = vadd.f32 0.0, %v1291
        %v1293 = vpop.f32.mrb[0].mxu0
        %v1294 = vpop.f32.mrb[0].mxu0
        %v1295 = vadd.f32 0.0, %v1294
        %v1296 = vpop.f32.mrb[0].mxu0
        %1297 = vmatprep.mubr.bf16.mxu0 0
        %1298 = vmatmul.mubr.bf16.gmra.mrb[0].mxu0 %v653
        %v1299 = vpop.f32.mrb[0].mxu0
        %v1300 = vadd.f32 0.0, %v1299
        %v1301 = vpop.f32.mrb[0].mxu0
        %v1302 = vpop.f32.mrb[0].mxu0
        %v1303 = vadd.f32 0.0, %v1302
        %v1304 = vpop.f32.mrb[0].mxu0
        %1305 = vmatprep.mubr.bf16.mxu0 0
        %1306 = vmatmul.mubr.bf16.gmra.mrb[0].mxu0 %v656
        %v1307 = vpop.f32.mrb[0].mxu0
        %v1308 = vadd.f32 0.0, %v1307
        %v1309 = vpop.f32.mrb[0].mxu0
        %v1310 = vpop.f32.mrb[0].mxu0
        %v1311 = vadd.f32 0.0, %v1310
        %v1312 = vpop.f32.mrb[0].mxu0
        %1313 = vmatprep.mubr.bf16.mxu0 0
        %1314 = vmatmul.mubr.bf16.gmra.mrb[0].mxu0 %v659
        %v1315 = vpop.f32.mrb[0].mxu0
        %v1316 = vadd.f32 0.0, %v1315
        %v1317 = vpop.f32.mrb[0].mxu0
        %v1318 = vpop.f32.mrb[0].mxu0
        %v1319 = vadd.f32 0.0, %v1318
        %v1320 = vpop.f32.mrb[0].mxu0
        %1321 = vmatprep.mubr.bf16.mxu0 0
        %1322 = vmatmul.mubr.bf16.gmra.mrb[0].mxu0 %v662
        %v1323 = vpop.f32.mrb[0].mxu0
        %v1324 = vadd.f32 0.0, %v1323
        %v1325 = vpop.f32.mrb[0].mxu0
        %v1326 = vpop.f32.mrb[0].mxu0
        %v1327 = vadd.f32 0.0, %v1326
        %v1328 = vpop.f32.mrb[0].mxu0
        %1329 = vmatprep.mubr.bf16.mxu0 0
        %1330 = vmatmul.mubr.bf16.gmra.mrb[0].mxu0 %v665
        %v1331 = vpop.f32.mrb[0].mxu0
        %v1332 = vadd.f32 0.0, %v1331
        %v1333 = vpop.f32.mrb[0].mxu0
        %v1334 = vpop.f32.mrb[0].mxu0
        %v1335 = vadd.f32 0.0, %v1334
        %v1336 = vpop.f32.mrb[0].mxu0
        %1337 = vmatprep.mubr.bf16.mxu0 0
        %1338 = vmatmul.mubr.bf16.gmra.mrb[0].mxu0 %v668
        %v1339 = vpop.f32.mrb[0].mxu0
        %v1340 = vadd.f32 0.0, %v1339
        %v1341 = vpop.f32.mrb[0].mxu0
        %v1342 = vpop.f32.mrb[0].mxu0
        %v1343 = vadd.f32 0.0, %v1342
        %v1344 = vpop.f32.mrb[0].mxu0
        %1345 = vmatprep.mubr.bf16.mxu0 0
        %1346 = vmatmul.mubr.bf16.gmra.mrb[0].mxu0 %v671
        %v1347 = vpop.f32.mrb[0].mxu0
        %v1348 = vadd.f32 0.0, %v1347
        %v1349 = vpop.f32.mrb[0].mxu0
        %v1350 = vpop.f32.mrb[0].mxu0
        %v1351 = vadd.f32 0.0, %v1350
        %v1352 = vpop.f32.mrb[0].mxu0
        %1353 = vmatprep.mubr.bf16.mxu0 0
        %1354 = vmatmul.mubr.bf16.gmra.mrb[0].mxu0 %v674
        %v1355 = vpop.f32.mrb[0].mxu0
        %v1356 = vadd.f32 0.0, %v1355
        %v1357 = vpop.f32.mrb[0].mxu0
        %v1358 = vpop.f32.mrb[0].mxu0
        %v1359 = vadd.f32 0.0, %v1358
        %v1360 = vpop.f32.mrb[0].mxu0
        %1361 = vmatprep.mubr.bf16.mxu0 0
        %1362 = vmatmul.mubr.bf16.gmra.mrb[0].mxu0 %v677
        %v1363 = vpop.f32.mrb[0].mxu0
        %v1364 = vadd.f32 0.0, %v1363
        %v1365 = vpop.f32.mrb[0].mxu0
        %v1366 = vpop.f32.mrb[0].mxu0
        %v1367 = vadd.f32 0.0, %v1366
        %v1368 = vpop.f32.mrb[0].mxu0
        %1369 = vmatprep.mubr.bf16.mxu0 0
        %1370 = vmatmul.mubr.bf16.gmra.mrb[0].mxu0 %v680
        %v1371 = vpop.f32.mrb[0].mxu0
        %v1372 = vadd.f32 0.0, %v1371
        %v1373 = vpop.f32.mrb[0].mxu0
        %v1374 = vpop.f32.mrb[0].mxu0
        %v1375 = vadd.f32 0.0, %v1374
        %v1376 = vpop.f32.mrb[0].mxu0
        %1377 = vmatprep.mubr.bf16.mxu0 0
        %1378 = vmatmul.mubr.bf16.gmra.mrb[0].mxu0 %v683
        %v1379 = vpop.f32.mrb[0].mxu0
        %v1380 = vadd.f32 0.0, %v1379
        %v1381 = vpop.f32.mrb[0].mxu0
        %v1382 = vpop.f32.mrb[0].mxu0
        %v1383 = vadd.f32 0.0, %v1382
        %v1384 = vpop.f32.mrb[0].mxu0
        %1385 = vmatprep.mubr.bf16.mxu0 0
        %1386 = vmatmul.mubr.bf16.gmra.mrb[0].mxu0 %v1228
        %v1387 = vpop.f32.mrb[0].mxu0
        %v1388 = vadd.f32 0.0, %v1387
        %v1389 = vpop.f32.mrb[0].mxu0
        %v1390 = vpop.f32.mrb[0].mxu0
        %v1391 = vadd.f32 0.0, %v1390
        %v1392 = vpop.f32.mrb[0].mxu0
        %1393 = vdwg.mxu0
        %v1394 = vadd.f32 %v1192, %v1268
        %v1395 = vadd.f32 %v1193, %v1271
        %v1396 = vadd.f32 %v1194, %v1276
        %v1397 = vadd.f32 %v1195, %v1279
        %v1398 = vadd.f32 %v1196, %v1284
        %v1399 = vadd.f32 %v1197, %v1287
        %v1400 = vadd.f32 %v1198, %v1292
        %v1401 = vadd.f32 %v1199, %v1295
        %v1402 = vadd.f32 %v1200, %v1300
        %v1403 = vadd.f32 %v1201, %v1303
        %v1404 = vadd.f32 %v1202, %v1308
        %v1405 = vadd.f32 %v1203, %v1311
        %v1406 = vadd.f32 %v1204, %v1316
        %v1407 = vadd.f32 %v1205, %v1319
        %v1408 = vadd.f32 %v1206, %v1324
        %v1409 = vadd.f32 %v1207, %v1327
        %v1410 = vadd.f32 %v1208, %v1332
        %v1411 = vadd.f32 %v1209, %v1335
        %v1412 = vadd.f32 %v1210, %v1340
        %v1413 = vadd.f32 %v1211, %v1343
        %v1414 = vadd.f32 %v1212, %v1348
        %v1415 = vadd.f32 %v1213, %v1351
        %v1416 = vadd.f32 %v1214, %v1356
        %v1417 = vadd.f32 %v1215, %v1359
        %v1418 = vadd.f32 %v1216, %v1364
        %v1419 = vadd.f32 %v1217, %v1367
        %v1420 = vadd.f32 %v1218, %v1372
        %v1421 = vadd.f32 %v1219, %v1375
        %v1422 = vadd.f32 %v1220, %v1380
        %v1423 = vadd.f32 %v1221, %v1383
        %v1424 = vadd.f32 %v1222, %v1388
        %v1425 = vadd.f32 %v1223, %v1391
        %v1429 = vrot.slane %v218, 1
        %v1430 = vrot.slane %v219, 1
        %v1431 = vsel %vm289, %v1429, %v1430
        %v1432 = vrot.slane %v220, 1
        %v1433 = vsel %vm289, %v1430, %v1432
        %v1436 = vpack.c.bf16 %v1433, %v1431
        %s1437 = scalar_lea.vmem %s1, 8
        %v1438 = vld [vmem:[%s1437] sm:$0x3]
        %v1440 = vsel %vm420, %v1436, 0
        %v1443 = vand.u32 %v1438, %v472
        %1445 = vmatprep.subr.bf16.mxu0 0
        %1446 = vmatpush1.bf16.msra.mxu0 %v1443
        %1447 = vmatprep.subr.bf16.mxu0 0
        %1448 = vmatpush1.bf16.msra.mxu0 0
        %1449 = vmatprep.subr.bf16.mxu0 0
        %1450 = vmatpush1.bf16.msra.mxu0 0
        %1451 = vmatprep.subr.bf16.mxu0 0
        %1452 = vmatpush1.bf16.msra.mxu0 0
        %1453 = vmatprep.subr.bf16.mxu0 0
        %1454 = vmatpush1.bf16.msra.mxu0 0
        %1455 = vmatprep.subr.bf16.mxu0 0
        %1456 = vmatpush1.bf16.msra.mxu0 0
        %1457 = vmatprep.subr.bf16.mxu0 0
        %1458 = vmatpush1.bf16.msra.mxu0 0
        %1459 = vmatprep.subr.bf16.mxu0 0
        %1460 = vmatpush1.bf16.msra.mxu0 0
        %1461 = vmatprep.subr.bf16.mxu0 0
        %1462 = vmatpush1.bf16.msra.mxu0 0
        %1463 = vmatprep.subr.bf16.mxu0 0
        %1464 = vmatpush1.bf16.msra.mxu0 0
        %1465 = vmatprep.subr.bf16.mxu0 0
        %1466 = vmatpush1.bf16.msra.mxu0 0
        %1467 = vmatprep.subr.bf16.mxu0 0
        %1468 = vmatpush1.bf16.msra.mxu0 0
        %1469 = vmatprep.subr.bf16.mxu0 0
        %1470 = vmatpush1.bf16.msra.mxu0 0
        %1471 = vmatprep.subr.bf16.mxu0 0
        %1472 = vmatpush1.bf16.msra.mxu0 0
        %1473 = vmatprep.subr.bf16.mxu0 0
        %1474 = vmatpush1.bf16.msra.mxu0 0
        %1475 = vmatprep.subr.bf16.mxu0 0
        %1476 = vmatpush1.bf16.msra.mxu0 0
        %1477 = vmatprep.mubr.bf16.mxu0 0
        %1478 = vmatmul.mubr.bf16.gmra.mrb[0].mxu0 %v425
        %v1479 = vpop.f32.mrb[0].mxu0
        %v1480 = vadd.f32 0.0, %v1479
        %v1481 = vpop.f32.mrb[0].mxu0
        %v1482 = vpop.f32.mrb[0].mxu0
        %v1483 = vadd.f32 0.0, %v1482
        %v1484 = vpop.f32.mrb[0].mxu0
        %1485 = vmatprep.mubr.bf16.mxu0 0
        %1486 = vmatmul.mubr.bf16.gmra.mrb[0].mxu0 %v428
        %v1487 = vpop.f32.mrb[0].mxu0
        %v1488 = vadd.f32 0.0, %v1487
        %v1489 = vpop.f32.mrb[0].mxu0
        %v1490 = vpop.f32.mrb[0].mxu0
        %v1491 = vadd.f32 0.0, %v1490
        %v1492 = vpop.f32.mrb[0].mxu0
        %1493 = vmatprep.mubr.bf16.mxu0 0
        %1494 = vmatmul.mubr.bf16.gmra.mrb[0].mxu0 %v431
        %v1495 = vpop.f32.mrb[0].mxu0
        %v1496 = vadd.f32 0.0, %v1495
        %v1497 = vpop.f32.mrb[0].mxu0
        %v1498 = vpop.f32.mrb[0].mxu0
        %v1499 = vadd.f32 0.0, %v1498
        %v1500 = vpop.f32.mrb[0].mxu0
        %1501 = vmatprep.mubr.bf16.mxu0 0
        %1502 = vmatmul.mubr.bf16.gmra.mrb[0].mxu0 %v434
        %v1503 = vpop.f32.mrb[0].mxu0
        %v1504 = vadd.f32 0.0, %v1503
        %v1505 = vpop.f32.mrb[0].mxu0
        %v1506 = vpop.f32.mrb[0].mxu0
        %v1507 = vadd.f32 0.0, %v1506
        %v1508 = vpop.f32.mrb[0].mxu0
        %1509 = vmatprep.mubr.bf16.mxu0 0
        %1510 = vmatmul.mubr.bf16.gmra.mrb[0].mxu0 %v437
        %v1511 = vpop.f32.mrb[0].mxu0
        %v1512 = vadd.f32 0.0, %v1511
        %v1513 = vpop.f32.mrb[0].mxu0
        %v1514 = vpop.f32.mrb[0].mxu0
        %v1515 = vadd.f32 0.0, %v1514
        %v1516 = vpop.f32.mrb[0].mxu0
        %1517 = vmatprep.mubr.bf16.mxu0 0
        %1518 = vmatmul.mubr.bf16.gmra.mrb[0].mxu0 %v440
        %v1519 = vpop.f32.mrb[0].mxu0
        %v1520 = vadd.f32 0.0, %v1519
        %v1521 = vpop.f32.mrb[0].mxu0
        %v1522 = vpop.f32.mrb[0].mxu0
        %v1523 = vadd.f32 0.0, %v1522
        %v1524 = vpop.f32.mrb[0].mxu0
        %1525 = vmatprep.mubr.bf16.mxu0 0
        %1526 = vmatmul.mubr.bf16.gmra.mrb[0].mxu0 %v443
        %v1527 = vpop.f32.mrb[0].mxu0
        %v1528 = vadd.f32 0.0, %v1527
        %v1529 = vpop.f32.mrb[0].mxu0
        %v1530 = vpop.f32.mrb[0].mxu0
        %v1531 = vadd.f32 0.0, %v1530
        %v1532 = vpop.f32.mrb[0].mxu0
        %1533 = vmatprep.mubr.bf16.mxu0 0
        %1534 = vmatmul.mubr.bf16.gmra.mrb[0].mxu0 %v446
        %v1535 = vpop.f32.mrb[0].mxu0
        %v1536 = vadd.f32 0.0, %v1535
        %v1537 = vpop.f32.mrb[0].mxu0
        %v1538 = vpop.f32.mrb[0].mxu0
        %v1539 = vadd.f32 0.0, %v1538
        %v1540 = vpop.f32.mrb[0].mxu0
        %1541 = vmatprep.mubr.bf16.mxu0 0
        %1542 = vmatmul.mubr.bf16.gmra.mrb[0].mxu0 %v449
        %v1543 = vpop.f32.mrb[0].mxu0
        %v1544 = vadd.f32 0.0, %v1543
        %v1545 = vpop.f32.mrb[0].mxu0
        %v1546 = vpop.f32.mrb[0].mxu0
        %v1547 = vadd.f32 0.0, %v1546
        %v1548 = vpop.f32.mrb[0].mxu0
        %1549 = vmatprep.mubr.bf16.mxu0 0
        %1550 = vmatmul.mubr.bf16.gmra.mrb[0].mxu0 %v452
        %v1551 = vpop.f32.mrb[0].mxu0
        %v1552 = vadd.f32 0.0, %v1551
        %v1553 = vpop.f32.mrb[0].mxu0
        %v1554 = vpop.f32.mrb[0].mxu0
        %v1555 = vadd.f32 0.0, %v1554
        %v1556 = vpop.f32.mrb[0].mxu0
        %1557 = vmatprep.mubr.bf16.mxu0 0
        %1558 = vmatmul.mubr.bf16.gmra.mrb[0].mxu0 %v455
        %v1559 = vpop.f32.mrb[0].mxu0
        %v1560 = vadd.f32 0.0, %v1559
        %v1561 = vpop.f32.mrb[0].mxu0
        %v1562 = vpop.f32.mrb[0].mxu0
        %v1563 = vadd.f32 0.0, %v1562
        %v1564 = vpop.f32.mrb[0].mxu0
        %1565 = vmatprep.mubr.bf16.mxu0 0
        %1566 = vmatmul.mubr.bf16.gmra.mrb[0].mxu0 %v458
        %v1567 = vpop.f32.mrb[0].mxu0
        %v1568 = vadd.f32 0.0, %v1567
        %v1569 = vpop.f32.mrb[0].mxu0
        %v1570 = vpop.f32.mrb[0].mxu0
        %v1571 = vadd.f32 0.0, %v1570
        %v1572 = vpop.f32.mrb[0].mxu0
        %1573 = vmatprep.mubr.bf16.mxu0 0
        %1574 = vmatmul.mubr.bf16.gmra.mrb[0].mxu0 %v461
        %v1575 = vpop.f32.mrb[0].mxu0
        %v1576 = vadd.f32 0.0, %v1575
        %v1577 = vpop.f32.mrb[0].mxu0
        %v1578 = vpop.f32.mrb[0].mxu0
        %v1579 = vadd.f32 0.0, %v1578
        %v1580 = vpop.f32.mrb[0].mxu0
        %1581 = vmatprep.mubr.bf16.mxu0 0
        %1582 = vmatmul.mubr.bf16.gmra.mrb[0].mxu0 %v464
        %v1583 = vpop.f32.mrb[0].mxu0
        %v1584 = vadd.f32 0.0, %v1583
        %v1585 = vpop.f32.mrb[0].mxu0
        %v1586 = vpop.f32.mrb[0].mxu0
        %v1587 = vadd.f32 0.0, %v1586
        %v1588 = vpop.f32.mrb[0].mxu0
        %1589 = vmatprep.mubr.bf16.mxu0 0
        %1590 = vmatmul.mubr.bf16.gmra.mrb[0].mxu0 %v467
        %v1591 = vpop.f32.mrb[0].mxu0
        %v1592 = vadd.f32 0.0, %v1591
        %v1593 = vpop.f32.mrb[0].mxu0
        %v1594 = vpop.f32.mrb[0].mxu0
        %v1595 = vadd.f32 0.0, %v1594
        %v1596 = vpop.f32.mrb[0].mxu0
        %1597 = vmatprep.mubr.bf16.mxu0 0
        %1598 = vmatmul.mubr.bf16.gmra.mrb[0].mxu0 %v1440
        %v1599 = vpop.f32.mrb[0].mxu0
        %v1600 = vadd.f32 0.0, %v1599
        %v1601 = vpop.f32.mrb[0].mxu0
        %v1602 = vpop.f32.mrb[0].mxu0
        %v1603 = vadd.f32 0.0, %v1602
        %v1604 = vpop.f32.mrb[0].mxu0
        %1605 = vdwg.mxu0
        %v1606 = vadd.f32 %v1394, %v1480
        %v1607 = vadd.f32 %v1395, %v1483
        %v1608 = vadd.f32 %v1396, %v1488
        %v1609 = vadd.f32 %v1397, %v1491
        %v1610 = vadd.f32 %v1398, %v1496
        %v1611 = vadd.f32 %v1399, %v1499
        %v1612 = vadd.f32 %v1400, %v1504
        %v1613 = vadd.f32 %v1401, %v1507
        %v1614 = vadd.f32 %v1402, %v1512
        %v1615 = vadd.f32 %v1403, %v1515
        %v1616 = vadd.f32 %v1404, %v1520
        %v1617 = vadd.f32 %v1405, %v1523
        %v1618 = vadd.f32 %v1406, %v1528
        %v1619 = vadd.f32 %v1407, %v1531
        %v1620 = vadd.f32 %v1408, %v1536
        %v1621 = vadd.f32 %v1409, %v1539
        %v1622 = vadd.f32 %v1410, %v1544
        %v1623 = vadd.f32 %v1411, %v1547
        %v1624 = vadd.f32 %v1412, %v1552
        %v1625 = vadd.f32 %v1413, %v1555
        %v1626 = vadd.f32 %v1414, %v1560
        %v1627 = vadd.f32 %v1415, %v1563
        %v1628 = vadd.f32 %v1416, %v1568
        %v1629 = vadd.f32 %v1417, %v1571
        %v1630 = vadd.f32 %v1418, %v1576
        %v1631 = vadd.f32 %v1419, %v1579
        %v1632 = vadd.f32 %v1420, %v1584
        %v1633 = vadd.f32 %v1421, %v1587
        %v1634 = vadd.f32 %v1422, %v1592
        %v1635 = vadd.f32 %v1423, %v1595
        %v1636 = vadd.f32 %v1424, %v1600
        %v1637 = vadd.f32 %v1425, %v1603
        %v1638 = vrot.slane %v218, 2
        %v1639 = vrot.slane %v219, 2
        %v1640 = vsel %vm849, %v1638, %v1639
        %v1641 = vrot.slane %v220, 2
        %v1642 = vsel %vm849, %v1639, %v1641
        %v1645 = vpack.c.bf16 %v1642, %v1640
        %s1646 = scalar_lea.vmem %s1, 10
        %v1647 = vld [vmem:[%s1646] sm:$0x3]
        %v1649 = vsel %vm420, %v1645, 0
        %v1652 = vand.u32 %v1647, %v472
        %1654 = vmatprep.subr.bf16.mxu0 0
        %1655 = vmatpush1.bf16.msra.mxu0 %v1652
        %1656 = vmatprep.subr.bf16.mxu0 0
        %1657 = vmatpush1.bf16.msra.mxu0 0
        %1658 = vmatprep.subr.bf16.mxu0 0
        %1659 = vmatpush1.bf16.msra.mxu0 0
        %1660 = vmatprep.subr.bf16.mxu0 0
        %1661 = vmatpush1.bf16.msra.mxu0 0
        %1662 = vmatprep.subr.bf16.mxu0 0
        %1663 = vmatpush1.bf16.msra.mxu0 0
        %1664 = vmatprep.subr.bf16.mxu0 0
        %1665 = vmatpush1.bf16.msra.mxu0 0
        %1666 = vmatprep.subr.bf16.mxu0 0
        %1667 = vmatpush1.bf16.msra.mxu0 0
        %1668 = vmatprep.subr.bf16.mxu0 0
        %1669 = vmatpush1.bf16.msra.mxu0 0
        %1670 = vmatprep.subr.bf16.mxu0 0
        %1671 = vmatpush1.bf16.msra.mxu0 0
        %1672 = vmatprep.subr.bf16.mxu0 0
        %1673 = vmatpush1.bf16.msra.mxu0 0
        %1674 = vmatprep.subr.bf16.mxu0 0
        %1675 = vmatpush1.bf16.msra.mxu0 0
        %1676 = vmatprep.subr.bf16.mxu0 0
        %1677 = vmatpush1.bf16.msra.mxu0 0
        %1678 = vmatprep.subr.bf16.mxu0 0
        %1679 = vmatpush1.bf16.msra.mxu0 0
        %1680 = vmatprep.subr.bf16.mxu0 0
        %1681 = vmatpush1.bf16.msra.mxu0 0
        %1682 = vmatprep.subr.bf16.mxu0 0
        %1683 = vmatpush1.bf16.msra.mxu0 0
        %1684 = vmatprep.subr.bf16.mxu0 0
        %1685 = vmatpush1.bf16.msra.mxu0 0
        %1686 = vmatprep.mubr.bf16.mxu0 0
        %1687 = vmatmul.mubr.bf16.gmra.mrb[0].mxu0 %v984
        %v1688 = vpop.f32.mrb[0].mxu0
        %v1689 = vadd.f32 0.0, %v1688
        %v1690 = vpop.f32.mrb[0].mxu0
        %v1691 = vpop.f32.mrb[0].mxu0
        %v1692 = vadd.f32 0.0, %v1691
        %v1693 = vpop.f32.mrb[0].mxu0
        %1694 = vmatprep.mubr.bf16.mxu0 0
        %1695 = vmatmul.mubr.bf16.gmra.mrb[0].mxu0 %v987
        %v1696 = vpop.f32.mrb[0].mxu0
        %v1697 = vadd.f32 0.0, %v1696
        %v1698 = vpop.f32.mrb[0].mxu0
        %v1699 = vpop.f32.mrb[0].mxu0
        %v1700 = vadd.f32 0.0, %v1699
        %v1701 = vpop.f32.mrb[0].mxu0
        %1702 = vmatprep.mubr.bf16.mxu0 0
        %1703 = vmatmul.mubr.bf16.gmra.mrb[0].mxu0 %v990
        %v1704 = vpop.f32.mrb[0].mxu0
        %v1705 = vadd.f32 0.0, %v1704
        %v1706 = vpop.f32.mrb[0].mxu0
        %v1707 = vpop.f32.mrb[0].mxu0
        %v1708 = vadd.f32 0.0, %v1707
        %v1709 = vpop.f32.mrb[0].mxu0
        %1710 = vmatprep.mubr.bf16.mxu0 0
        %1711 = vmatmul.mubr.bf16.gmra.mrb[0].mxu0 %v993
        %v1712 = vpop.f32.mrb[0].mxu0
        %v1713 = vadd.f32 0.0, %v1712
        %v1714 = vpop.f32.mrb[0].mxu0
        %v1715 = vpop.f32.mrb[0].mxu0
        %v1716 = vadd.f32 0.0, %v1715
        %v1717 = vpop.f32.mrb[0].mxu0
        %1718 = vmatprep.mubr.bf16.mxu0 0
        %1719 = vmatmul.mubr.bf16.gmra.mrb[0].mxu0 %v996
        %v1720 = vpop.f32.mrb[0].mxu0
        %v1721 = vadd.f32 0.0, %v1720
        %v1722 = vpop.f32.mrb[0].mxu0
        %v1723 = vpop.f32.mrb[0].mxu0
        %v1724 = vadd.f32 0.0, %v1723
        %v1725 = vpop.f32.mrb[0].mxu0
        %1726 = vmatprep.mubr.bf16.mxu0 0
        %1727 = vmatmul.mubr.bf16.gmra.mrb[0].mxu0 %v999
        %v1728 = vpop.f32.mrb[0].mxu0
        %v1729 = vadd.f32 0.0, %v1728
        %v1730 = vpop.f32.mrb[0].mxu0
        %v1731 = vpop.f32.mrb[0].mxu0
        %v1732 = vadd.f32 0.0, %v1731
        %v1733 = vpop.f32.mrb[0].mxu0
        %1734 = vmatprep.mubr.bf16.mxu0 0
        %1735 = vmatmul.mubr.bf16.gmra.mrb[0].mxu0 %v1002
        %v1736 = vpop.f32.mrb[0].mxu0
        %v1737 = vadd.f32 0.0, %v1736
        %v1738 = vpop.f32.mrb[0].mxu0
        %v1739 = vpop.f32.mrb[0].mxu0
        %v1740 = vadd.f32 0.0, %v1739
        %v1741 = vpop.f32.mrb[0].mxu0
        %1742 = vmatprep.mubr.bf16.mxu0 0
        %1743 = vmatmul.mubr.bf16.gmra.mrb[0].mxu0 %v1005
        %v1744 = vpop.f32.mrb[0].mxu0
        %v1745 = vadd.f32 0.0, %v1744
        %v1746 = vpop.f32.mrb[0].mxu0
        %v1747 = vpop.f32.mrb[0].mxu0
        %v1748 = vadd.f32 0.0, %v1747
        %v1749 = vpop.f32.mrb[0].mxu0
        %1750 = vmatprep.mubr.bf16.mxu0 0
        %1751 = vmatmul.mubr.bf16.gmra.mrb[0].mxu0 %v1008
        %v1752 = vpop.f32.mrb[0].mxu0
        %v1753 = vadd.f32 0.0, %v1752
        %v1754 = vpop.f32.mrb[0].mxu0
        %v1755 = vpop.f32.mrb[0].mxu0
        %v1756 = vadd.f32 0.0, %v1755
        %v1757 = vpop.f32.mrb[0].mxu0
        %1758 = vmatprep.mubr.bf16.mxu0 0
        %1759 = vmatmul.mubr.bf16.gmra.mrb[0].mxu0 %v1011
        %v1760 = vpop.f32.mrb[0].mxu0
        %v1761 = vadd.f32 0.0, %v1760
        %v1762 = vpop.f32.mrb[0].mxu0
        %v1763 = vpop.f32.mrb[0].mxu0
        %v1764 = vadd.f32 0.0, %v1763
        %v1765 = vpop.f32.mrb[0].mxu0
        %1766 = vmatprep.mubr.bf16.mxu0 0
        %1767 = vmatmul.mubr.bf16.gmra.mrb[0].mxu0 %v1014
        %v1768 = vpop.f32.mrb[0].mxu0
        %v1769 = vadd.f32 0.0, %v1768
        %v1770 = vpop.f32.mrb[0].mxu0
        %v1771 = vpop.f32.mrb[0].mxu0
        %v1772 = vadd.f32 0.0, %v1771
        %v1773 = vpop.f32.mrb[0].mxu0
        %1774 = vmatprep.mubr.bf16.mxu0 0
        %1775 = vmatmul.mubr.bf16.gmra.mrb[0].mxu0 %v1017
        %v1776 = vpop.f32.mrb[0].mxu0
        %v1777 = vadd.f32 0.0, %v1776
        %v1778 = vpop.f32.mrb[0].mxu0
        %v1779 = vpop.f32.mrb[0].mxu0
        %v1780 = vadd.f32 0.0, %v1779
        %v1781 = vpop.f32.mrb[0].mxu0
        %1782 = vmatprep.mubr.bf16.mxu0 0
        %1783 = vmatmul.mubr.bf16.gmra.mrb[0].mxu0 %v1020
        %v1784 = vpop.f32.mrb[0].mxu0
        %v1785 = vadd.f32 0.0, %v1784
        %v1786 = vpop.f32.mrb[0].mxu0
        %v1787 = vpop.f32.mrb[0].mxu0
        %v1788 = vadd.f32 0.0, %v1787
        %v1789 = vpop.f32.mrb[0].mxu0
        %1790 = vmatprep.mubr.bf16.mxu0 0
        %1791 = vmatmul.mubr.bf16.gmra.mrb[0].mxu0 %v1023
        %v1792 = vpop.f32.mrb[0].mxu0
        %v1793 = vadd.f32 0.0, %v1792
        %v1794 = vpop.f32.mrb[0].mxu0
        %v1795 = vpop.f32.mrb[0].mxu0
        %v1796 = vadd.f32 0.0, %v1795
        %v1797 = vpop.f32.mrb[0].mxu0
        %1798 = vmatprep.mubr.bf16.mxu0 0
        %1799 = vmatmul.mubr.bf16.gmra.mrb[0].mxu0 %v1026
        %v1800 = vpop.f32.mrb[0].mxu0
        %v1801 = vadd.f32 0.0, %v1800
        %v1802 = vpop.f32.mrb[0].mxu0
        %v1803 = vpop.f32.mrb[0].mxu0
        %v1804 = vadd.f32 0.0, %v1803
        %v1805 = vpop.f32.mrb[0].mxu0
        %1806 = vmatprep.mubr.bf16.mxu0 0
        %1807 = vmatmul.mubr.bf16.gmra.mrb[0].mxu0 %v1649
        %v1808 = vpop.f32.mrb[0].mxu0
        %v1809 = vadd.f32 0.0, %v1808
        %v1810 = vpop.f32.mrb[0].mxu0
        %v1811 = vpop.f32.mrb[0].mxu0
        %v1812 = vadd.f32 0.0, %v1811
        %v1813 = vpop.f32.mrb[0].mxu0
        %1814 = vdwg.mxu0
        %v1815 = vadd.f32 %v1606, %v1689
        %v1816 = vadd.f32 %v1607, %v1692
        %v1817 = vadd.f32 %v1608, %v1697
        %v1818 = vadd.f32 %v1609, %v1700
        %v1819 = vadd.f32 %v1610, %v1705
        %v1820 = vadd.f32 %v1611, %v1708
        %v1821 = vadd.f32 %v1612, %v1713
        %v1822 = vadd.f32 %v1613, %v1716
        %v1823 = vadd.f32 %v1614, %v1721
        %v1824 = vadd.f32 %v1615, %v1724
        %v1825 = vadd.f32 %v1616, %v1729
        %v1826 = vadd.f32 %v1617, %v1732
        %v1827 = vadd.f32 %v1618, %v1737
        %v1828 = vadd.f32 %v1619, %v1740
        %v1829 = vadd.f32 %v1620, %v1745
        %v1830 = vadd.f32 %v1621, %v1748
        %v1831 = vadd.f32 %v1622, %v1753
        %v1832 = vadd.f32 %v1623, %v1756
        %v1833 = vadd.f32 %v1624, %v1761
        %v1834 = vadd.f32 %v1625, %v1764
        %v1835 = vadd.f32 %v1626, %v1769
        %v1836 = vadd.f32 %v1627, %v1772
        %v1837 = vadd.f32 %v1628, %v1777
        %v1838 = vadd.f32 %v1629, %v1780
        %v1839 = vadd.f32 %v1630, %v1785
        %v1840 = vadd.f32 %v1631, %v1788
        %v1841 = vadd.f32 %v1632, %v1793
        %v1842 = vadd.f32 %v1633, %v1796
        %v1843 = vadd.f32 %v1634, %v1801
        %v1844 = vadd.f32 %v1635, %v1804
        %v1845 = vadd.f32 %v1636, %v1809
        %v1846 = vadd.f32 %v1637, %v1812
        %v1847 = vpack.c.bf16 %v222, %v221
        %s1848 = scalar_lea.vmem %s1, 12
        %v1849 = vld [vmem:[%s1848] sm:$0x3]
        %v1851 = vsel %vm420, %v1847, 0
        %v1854 = vand.u32 %v1849, %v472
        %1856 = vmatprep.subr.bf16.mxu0 0
        %1857 = vmatpush1.bf16.msra.mxu0 %v1854
        %1858 = vmatprep.subr.bf16.mxu0 0
        %1859 = vmatpush1.bf16.msra.mxu0 0
        %1860 = vmatprep.subr.bf16.mxu0 0
        %1861 = vmatpush1.bf16.msra.mxu0 0
        %1862 = vmatprep.subr.bf16.mxu0 0
        %1863 = vmatpush1.bf16.msra.mxu0 0
        %1864 = vmatprep.subr.bf16.mxu0 0
        %1865 = vmatpush1.bf16.msra.mxu0 0
        %1866 = vmatprep.subr.bf16.mxu0 0
        %1867 = vmatpush1.bf16.msra.mxu0 0
        %1868 = vmatprep.subr.bf16.mxu0 0
        %1869 = vmatpush1.bf16.msra.mxu0 0
        %1870 = vmatprep.subr.bf16.mxu0 0
        %1871 = vmatpush1.bf16.msra.mxu0 0
        %1872 = vmatprep.subr.bf16.mxu0 0
        %1873 = vmatpush1.bf16.msra.mxu0 0
        %1874 = vmatprep.subr.bf16.mxu0 0
        %1875 = vmatpush1.bf16.msra.mxu0 0
        %1876 = vmatprep.subr.bf16.mxu0 0
        %1877 = vmatpush1.bf16.msra.mxu0 0
        %1878 = vmatprep.subr.bf16.mxu0 0
        %1879 = vmatpush1.bf16.msra.mxu0 0
        %1880 = vmatprep.subr.bf16.mxu0 0
        %1881 = vmatpush1.bf16.msra.mxu0 0
        %1882 = vmatprep.subr.bf16.mxu0 0
        %1883 = vmatpush1.bf16.msra.mxu0 0
        %1884 = vmatprep.subr.bf16.mxu0 0
        %1885 = vmatpush1.bf16.msra.mxu0 0
        %1886 = vmatprep.subr.bf16.mxu0 0
        %1887 = vmatpush1.bf16.msra.mxu0 0
        %1888 = vmatprep.mubr.bf16.mxu0 0
        %1889 = vmatmul.mubr.bf16.gmra.mrb[0].mxu0 %v644
        %v1890 = vpop.f32.mrb[0].mxu0
        %v1891 = vadd.f32 0.0, %v1890
        %v1892 = vpop.f32.mrb[0].mxu0
        %v1893 = vpop.f32.mrb[0].mxu0
        %v1894 = vadd.f32 0.0, %v1893
        %v1895 = vpop.f32.mrb[0].mxu0
        %1896 = vmatprep.mubr.bf16.mxu0 0
        %1897 = vmatmul.mubr.bf16.gmra.mrb[0].mxu0 %v647
        %v1898 = vpop.f32.mrb[0].mxu0
        %v1899 = vadd.f32 0.0, %v1898
        %v1900 = vpop.f32.mrb[0].mxu0
        %v1901 = vpop.f32.mrb[0].mxu0
        %v1902 = vadd.f32 0.0, %v1901
        %v1903 = vpop.f32.mrb[0].mxu0
        %1904 = vmatprep.mubr.bf16.mxu0 0
        %1905 = vmatmul.mubr.bf16.gmra.mrb[0].mxu0 %v650
        %v1906 = vpop.f32.mrb[0].mxu0
        %v1907 = vadd.f32 0.0, %v1906
        %v1908 = vpop.f32.mrb[0].mxu0
        %v1909 = vpop.f32.mrb[0].mxu0
        %v1910 = vadd.f32 0.0, %v1909
        %v1911 = vpop.f32.mrb[0].mxu0
        %1912 = vmatprep.mubr.bf16.mxu0 0
        %1913 = vmatmul.mubr.bf16.gmra.mrb[0].mxu0 %v653
        %v1914 = vpop.f32.mrb[0].mxu0
        %v1915 = vadd.f32 0.0, %v1914
        %v1916 = vpop.f32.mrb[0].mxu0
        %v1917 = vpop.f32.mrb[0].mxu0
        %v1918 = vadd.f32 0.0, %v1917
        %v1919 = vpop.f32.mrb[0].mxu0
        %1920 = vmatprep.mubr.bf16.mxu0 0
        %1921 = vmatmul.mubr.bf16.gmra.mrb[0].mxu0 %v656
        %v1922 = vpop.f32.mrb[0].mxu0
        %v1923 = vadd.f32 0.0, %v1922
        %v1924 = vpop.f32.mrb[0].mxu0
        %v1925 = vpop.f32.mrb[0].mxu0
        %v1926 = vadd.f32 0.0, %v1925
        %v1927 = vpop.f32.mrb[0].mxu0
        %1928 = vmatprep.mubr.bf16.mxu0 0
        %1929 = vmatmul.mubr.bf16.gmra.mrb[0].mxu0 %v659
        %v1930 = vpop.f32.mrb[0].mxu0
        %v1931 = vadd.f32 0.0, %v1930
        %v1932 = vpop.f32.mrb[0].mxu0
        %v1933 = vpop.f32.mrb[0].mxu0
        %v1934 = vadd.f32 0.0, %v1933
        %v1935 = vpop.f32.mrb[0].mxu0
        %1936 = vmatprep.mubr.bf16.mxu0 0
        %1937 = vmatmul.mubr.bf16.gmra.mrb[0].mxu0 %v662
        %v1938 = vpop.f32.mrb[0].mxu0
        %v1939 = vadd.f32 0.0, %v1938
        %v1940 = vpop.f32.mrb[0].mxu0
        %v1941 = vpop.f32.mrb[0].mxu0
        %v1942 = vadd.f32 0.0, %v1941
        %v1943 = vpop.f32.mrb[0].mxu0
        %1944 = vmatprep.mubr.bf16.mxu0 0
        %1945 = vmatmul.mubr.bf16.gmra.mrb[0].mxu0 %v665
        %v1946 = vpop.f32.mrb[0].mxu0
        %v1947 = vadd.f32 0.0, %v1946
        %v1948 = vpop.f32.mrb[0].mxu0
        %v1949 = vpop.f32.mrb[0].mxu0
        %v1950 = vadd.f32 0.0, %v1949
        %v1951 = vpop.f32.mrb[0].mxu0
        %1952 = vmatprep.mubr.bf16.mxu0 0
        %1953 = vmatmul.mubr.bf16.gmra.mrb[0].mxu0 %v668
        %v1954 = vpop.f32.mrb[0].mxu0
        %v1955 = vadd.f32 0.0, %v1954
        %v1956 = vpop.f32.mrb[0].mxu0
        %v1957 = vpop.f32.mrb[0].mxu0
        %v1958 = vadd.f32 0.0, %v1957
        %v1959 = vpop.f32.mrb[0].mxu0
        %1960 = vmatprep.mubr.bf16.mxu0 0
        %1961 = vmatmul.mubr.bf16.gmra.mrb[0].mxu0 %v671
        %v1962 = vpop.f32.mrb[0].mxu0
        %v1963 = vadd.f32 0.0, %v1962
        %v1964 = vpop.f32.mrb[0].mxu0
        %v1965 = vpop.f32.mrb[0].mxu0
        %v1966 = vadd.f32 0.0, %v1965
        %v1967 = vpop.f32.mrb[0].mxu0
        %1968 = vmatprep.mubr.bf16.mxu0 0
        %1969 = vmatmul.mubr.bf16.gmra.mrb[0].mxu0 %v674
        %v1970 = vpop.f32.mrb[0].mxu0
        %v1971 = vadd.f32 0.0, %v1970
        %v1972 = vpop.f32.mrb[0].mxu0
        %v1973 = vpop.f32.mrb[0].mxu0
        %v1974 = vadd.f32 0.0, %v1973
        %v1975 = vpop.f32.mrb[0].mxu0
        %1976 = vmatprep.mubr.bf16.mxu0 0
        %1977 = vmatmul.mubr.bf16.gmra.mrb[0].mxu0 %v677
        %v1978 = vpop.f32.mrb[0].mxu0
        %v1979 = vadd.f32 0.0, %v1978
        %v1980 = vpop.f32.mrb[0].mxu0
        %v1981 = vpop.f32.mrb[0].mxu0
        %v1982 = vadd.f32 0.0, %v1981
        %v1983 = vpop.f32.mrb[0].mxu0
        %1984 = vmatprep.mubr.bf16.mxu0 0
        %1985 = vmatmul.mubr.bf16.gmra.mrb[0].mxu0 %v680
        %v1986 = vpop.f32.mrb[0].mxu0
        %v1987 = vadd.f32 0.0, %v1986
        %v1988 = vpop.f32.mrb[0].mxu0
        %v1989 = vpop.f32.mrb[0].mxu0
        %v1990 = vadd.f32 0.0, %v1989
        %v1991 = vpop.f32.mrb[0].mxu0
        %1992 = vmatprep.mubr.bf16.mxu0 0
        %1993 = vmatmul.mubr.bf16.gmra.mrb[0].mxu0 %v683
        %v1994 = vpop.f32.mrb[0].mxu0
        %v1995 = vadd.f32 0.0, %v1994
        %v1996 = vpop.f32.mrb[0].mxu0
        %v1997 = vpop.f32.mrb[0].mxu0
        %v1998 = vadd.f32 0.0, %v1997
        %v1999 = vpop.f32.mrb[0].mxu0
        %2000 = vmatprep.mubr.bf16.mxu0 0
        %2001 = vmatmul.mubr.bf16.gmra.mrb[0].mxu0 %v1228
        %v2002 = vpop.f32.mrb[0].mxu0
        %v2003 = vadd.f32 0.0, %v2002
        %v2004 = vpop.f32.mrb[0].mxu0
        %v2005 = vpop.f32.mrb[0].mxu0
        %v2006 = vadd.f32 0.0, %v2005
        %v2007 = vpop.f32.mrb[0].mxu0
        %2008 = vmatprep.mubr.bf16.mxu0 0
        %2009 = vmatmul.mubr.bf16.gmra.mrb[0].mxu0 %v1851
        %v2010 = vpop.f32.mrb[0].mxu0
        %v2011 = vadd.f32 0.0, %v2010
        %v2012 = vpop.f32.mrb[0].mxu0
        %v2013 = vpop.f32.mrb[0].mxu0
        %v2014 = vadd.f32 0.0, %v2013
        %v2015 = vpop.f32.mrb[0].mxu0
        %2016 = vdwg.mxu0
        %v2017 = vadd.f32 %v1815, %v1891
        %v2018 = vadd.f32 %v1816, %v1894
        %v2019 = vadd.f32 %v1817, %v1899
        %v2020 = vadd.f32 %v1818, %v1902
        %v2021 = vadd.f32 %v1819, %v1907
        %v2022 = vadd.f32 %v1820, %v1910
        %v2023 = vadd.f32 %v1821, %v1915
        %v2024 = vadd.f32 %v1822, %v1918
        %v2025 = vadd.f32 %v1823, %v1923
        %v2026 = vadd.f32 %v1824, %v1926
        %v2027 = vadd.f32 %v1825, %v1931
        %v2028 = vadd.f32 %v1826, %v1934
        %v2029 = vadd.f32 %v1827, %v1939
        %v2030 = vadd.f32 %v1828, %v1942
        %v2031 = vadd.f32 %v1829, %v1947
        %v2032 = vadd.f32 %v1830, %v1950
        %v2033 = vadd.f32 %v1831, %v1955
        %v2034 = vadd.f32 %v1832, %v1958
        %v2035 = vadd.f32 %v1833, %v1963
        %v2036 = vadd.f32 %v1834, %v1966
        %v2037 = vadd.f32 %v1835, %v1971
        %v2038 = vadd.f32 %v1836, %v1974
        %v2039 = vadd.f32 %v1837, %v1979
        %v2040 = vadd.f32 %v1838, %v1982
        %v2041 = vadd.f32 %v1839, %v1987
        %v2042 = vadd.f32 %v1840, %v1990
        %v2043 = vadd.f32 %v1841, %v1995
        %v2044 = vadd.f32 %v1842, %v1998
        %v2045 = vadd.f32 %v1843, %v2003
        %v2046 = vadd.f32 %v1844, %v2006
        %v2047 = vadd.f32 %v1845, %v2011
        %v2048 = vadd.f32 %v1846, %v2014
        %v2052 = vrot.slane %v221, 1
        %v2053 = vrot.slane %v222, 1
        %v2054 = vsel %vm289, %v2052, %v2053
        %v2055 = vrot.slane %v223, 1
        %v2056 = vsel %vm289, %v2053, %v2055
        %v2059 = vpack.c.bf16 %v2056, %v2054
        %s2060 = scalar_lea.vmem %s1, 14
        %v2061 = vld [vmem:[%s2060] sm:$0x3]
        %v2063 = vsel %vm420, %v2059, 0
        %v2066 = vand.u32 %v2061, %v472
        %2068 = vmatprep.subr.bf16.mxu0 0
        %2069 = vmatpush1.bf16.msra.mxu0 %v2066
        %2070 = vmatprep.subr.bf16.mxu0 0
        %2071 = vmatpush1.bf16.msra.mxu0 0
        %2072 = vmatprep.subr.bf16.mxu0 0
        %2073 = vmatpush1.bf16.msra.mxu0 0
        %2074 = vmatprep.subr.bf16.mxu0 0
        %2075 = vmatpush1.bf16.msra.mxu0 0
        %2076 = vmatprep.subr.bf16.mxu0 0
        %2077 = vmatpush1.bf16.msra.mxu0 0
        %2078 = vmatprep.subr.bf16.mxu0 0
        %2079 = vmatpush1.bf16.msra.mxu0 0
        %2080 = vmatprep.subr.bf16.mxu0 0
        %2081 = vmatpush1.bf16.msra.mxu0 0
        %2082 = vmatprep.subr.bf16.mxu0 0
        %2083 = vmatpush1.bf16.msra.mxu0 0
        %2084 = vmatprep.subr.bf16.mxu0 0
        %2085 = vmatpush1.bf16.msra.mxu0 0
        %2086 = vmatprep.subr.bf16.mxu0 0
        %2087 = vmatpush1.bf16.msra.mxu0 0
        %2088 = vmatprep.subr.bf16.mxu0 0
        %2089 = vmatpush1.bf16.msra.mxu0 0
        %2090 = vmatprep.subr.bf16.mxu0 0
        %2091 = vmatpush1.bf16.msra.mxu0 0
        %2092 = vmatprep.subr.bf16.mxu0 0
        %2093 = vmatpush1.bf16.msra.mxu0 0
        %2094 = vmatprep.subr.bf16.mxu0 0
        %2095 = vmatpush1.bf16.msra.mxu0 0
        %2096 = vmatprep.subr.bf16.mxu0 0
        %2097 = vmatpush1.bf16.msra.mxu0 0
        %2098 = vmatprep.subr.bf16.mxu0 0
        %2099 = vmatpush1.bf16.msra.mxu0 0
        %2100 = vmatprep.mubr.bf16.mxu0 0
        %2101 = vmatmul.mubr.bf16.gmra.mrb[0].mxu0 %v428
        %v2102 = vpop.f32.mrb[0].mxu0
        %v2103 = vadd.f32 0.0, %v2102
        %v2104 = vpop.f32.mrb[0].mxu0
        %v2105 = vpop.f32.mrb[0].mxu0
        %v2106 = vadd.f32 0.0, %v2105
        %v2107 = vpop.f32.mrb[0].mxu0
        %2108 = vmatprep.mubr.bf16.mxu0 0
        %2109 = vmatmul.mubr.bf16.gmra.mrb[0].mxu0 %v431
        %v2110 = vpop.f32.mrb[0].mxu0
        %v2111 = vadd.f32 0.0, %v2110
        %v2112 = vpop.f32.mrb[0].mxu0
        %v2113 = vpop.f32.mrb[0].mxu0
        %v2114 = vadd.f32 0.0, %v2113
        %v2115 = vpop.f32.mrb[0].mxu0
        %2116 = vmatprep.mubr.bf16.mxu0 0
        %2117 = vmatmul.mubr.bf16.gmra.mrb[0].mxu0 %v434
        %v2118 = vpop.f32.mrb[0].mxu0
        %v2119 = vadd.f32 0.0, %v2118
        %v2120 = vpop.f32.mrb[0].mxu0
        %v2121 = vpop.f32.mrb[0].mxu0
        %v2122 = vadd.f32 0.0, %v2121
        %v2123 = vpop.f32.mrb[0].mxu0
        %2124 = vmatprep.mubr.bf16.mxu0 0
        %2125 = vmatmul.mubr.bf16.gmra.mrb[0].mxu0 %v437
        %v2126 = vpop.f32.mrb[0].mxu0
        %v2127 = vadd.f32 0.0, %v2126
        %v2128 = vpop.f32.mrb[0].mxu0
        %v2129 = vpop.f32.mrb[0].mxu0
        %v2130 = vadd.f32 0.0, %v2129
        %v2131 = vpop.f32.mrb[0].mxu0
        %2132 = vmatprep.mubr.bf16.mxu0 0
        %2133 = vmatmul.mubr.bf16.gmra.mrb[0].mxu0 %v440
        %v2134 = vpop.f32.mrb[0].mxu0
        %v2135 = vadd.f32 0.0, %v2134
        %v2136 = vpop.f32.mrb[0].mxu0
        %v2137 = vpop.f32.mrb[0].mxu0
        %v2138 = vadd.f32 0.0, %v2137
        %v2139 = vpop.f32.mrb[0].mxu0
        %2140 = vmatprep.mubr.bf16.mxu0 0
        %2141 = vmatmul.mubr.bf16.gmra.mrb[0].mxu0 %v443
        %v2142 = vpop.f32.mrb[0].mxu0
        %v2143 = vadd.f32 0.0, %v2142
        %v2144 = vpop.f32.mrb[0].mxu0
        %v2145 = vpop.f32.mrb[0].mxu0
        %v2146 = vadd.f32 0.0, %v2145
        %v2147 = vpop.f32.mrb[0].mxu0
        %2148 = vmatprep.mubr.bf16.mxu0 0
        %2149 = vmatmul.mubr.bf16.gmra.mrb[0].mxu0 %v446
        %v2150 = vpop.f32.mrb[0].mxu0
        %v2151 = vadd.f32 0.0, %v2150
        %v2152 = vpop.f32.mrb[0].mxu0
        %v2153 = vpop.f32.mrb[0].mxu0
        %v2154 = vadd.f32 0.0, %v2153
        %v2155 = vpop.f32.mrb[0].mxu0
        %2156 = vmatprep.mubr.bf16.mxu0 0
        %2157 = vmatmul.mubr.bf16.gmra.mrb[0].mxu0 %v449
        %v2158 = vpop.f32.mrb[0].mxu0
        %v2159 = vadd.f32 0.0, %v2158
        %v2160 = vpop.f32.mrb[0].mxu0
        %v2161 = vpop.f32.mrb[0].mxu0
        %v2162 = vadd.f32 0.0, %v2161
        %v2163 = vpop.f32.mrb[0].mxu0
        %2164 = vmatprep.mubr.bf16.mxu0 0
        %2165 = vmatmul.mubr.bf16.gmra.mrb[0].mxu0 %v452
        %v2166 = vpop.f32.mrb[0].mxu0
        %v2167 = vadd.f32 0.0, %v2166
        %v2168 = vpop.f32.mrb[0].mxu0
        %v2169 = vpop.f32.mrb[0].mxu0
        %v2170 = vadd.f32 0.0, %v2169
        %v2171 = vpop.f32.mrb[0].mxu0
        %2172 = vmatprep.mubr.bf16.mxu0 0
        %2173 = vmatmul.mubr.bf16.gmra.mrb[0].mxu0 %v455
        %v2174 = vpop.f32.mrb[0].mxu0
        %v2175 = vadd.f32 0.0, %v2174
        %v2176 = vpop.f32.mrb[0].mxu0
        %v2177 = vpop.f32.mrb[0].mxu0
        %v2178 = vadd.f32 0.0, %v2177
        %v2179 = vpop.f32.mrb[0].mxu0
        %2180 = vmatprep.mubr.bf16.mxu0 0
        %2181 = vmatmul.mubr.bf16.gmra.mrb[0].mxu0 %v458
        %v2182 = vpop.f32.mrb[0].mxu0
        %v2183 = vadd.f32 0.0, %v2182
        %v2184 = vpop.f32.mrb[0].mxu0
        %v2185 = vpop.f32.mrb[0].mxu0
        %v2186 = vadd.f32 0.0, %v2185
        %v2187 = vpop.f32.mrb[0].mxu0
        %2188 = vmatprep.mubr.bf16.mxu0 0
        %2189 = vmatmul.mubr.bf16.gmra.mrb[0].mxu0 %v461
        %v2190 = vpop.f32.mrb[0].mxu0
        %v2191 = vadd.f32 0.0, %v2190
        %v2192 = vpop.f32.mrb[0].mxu0
        %v2193 = vpop.f32.mrb[0].mxu0
        %v2194 = vadd.f32 0.0, %v2193
        %v2195 = vpop.f32.mrb[0].mxu0
        %2196 = vmatprep.mubr.bf16.mxu0 0
        %2197 = vmatmul.mubr.bf16.gmra.mrb[0].mxu0 %v464
        %v2198 = vpop.f32.mrb[0].mxu0
        %v2199 = vadd.f32 0.0, %v2198
        %v2200 = vpop.f32.mrb[0].mxu0
        %v2201 = vpop.f32.mrb[0].mxu0
        %v2202 = vadd.f32 0.0, %v2201
        %v2203 = vpop.f32.mrb[0].mxu0
        %2204 = vmatprep.mubr.bf16.mxu0 0
        %2205 = vmatmul.mubr.bf16.gmra.mrb[0].mxu0 %v467
        %v2206 = vpop.f32.mrb[0].mxu0
        %v2207 = vadd.f32 0.0, %v2206
        %v2208 = vpop.f32.mrb[0].mxu0
        %v2209 = vpop.f32.mrb[0].mxu0
        %v2210 = vadd.f32 0.0, %v2209
        %v2211 = vpop.f32.mrb[0].mxu0
        %2212 = vmatprep.mubr.bf16.mxu0 0
        %2213 = vmatmul.mubr.bf16.gmra.mrb[0].mxu0 %v1440
        %v2214 = vpop.f32.mrb[0].mxu0
        %v2215 = vadd.f32 0.0, %v2214
        %v2216 = vpop.f32.mrb[0].mxu0
        %v2217 = vpop.f32.mrb[0].mxu0
        %v2218 = vadd.f32 0.0, %v2217
        %v2219 = vpop.f32.mrb[0].mxu0
        %2220 = vmatprep.mubr.bf16.mxu0 0
        %2221 = vmatmul.mubr.bf16.gmra.mrb[0].mxu0 %v2063
        %v2222 = vpop.f32.mrb[0].mxu0
        %v2223 = vadd.f32 0.0, %v2222
        %v2224 = vpop.f32.mrb[0].mxu0
        %v2225 = vpop.f32.mrb[0].mxu0
        %v2226 = vadd.f32 0.0, %v2225
        %v2227 = vpop.f32.mrb[0].mxu0
        %2228 = vdwg.mxu0
        %v2229 = vadd.f32 %v2017, %v2103
        %v2230 = vadd.f32 %v2018, %v2106
        %v2231 = vadd.f32 %v2019, %v2111
        %v2232 = vadd.f32 %v2020, %v2114
        %v2233 = vadd.f32 %v2021, %v2119
        %v2234 = vadd.f32 %v2022, %v2122
        %v2235 = vadd.f32 %v2023, %v2127
        %v2236 = vadd.f32 %v2024, %v2130
        %v2237 = vadd.f32 %v2025, %v2135
        %v2238 = vadd.f32 %v2026, %v2138
        %v2239 = vadd.f32 %v2027, %v2143
        %v2240 = vadd.f32 %v2028, %v2146
        %v2241 = vadd.f32 %v2029, %v2151
        %v2242 = vadd.f32 %v2030, %v2154
        %v2243 = vadd.f32 %v2031, %v2159
        %v2244 = vadd.f32 %v2032, %v2162
        %v2245 = vadd.f32 %v2033, %v2167
        %v2246 = vadd.f32 %v2034, %v2170
        %v2247 = vadd.f32 %v2035, %v2175
        %v2248 = vadd.f32 %v2036, %v2178
        %v2249 = vadd.f32 %v2037, %v2183
        %v2250 = vadd.f32 %v2038, %v2186
        %v2251 = vadd.f32 %v2039, %v2191
        %v2252 = vadd.f32 %v2040, %v2194
        %v2253 = vadd.f32 %v2041, %v2199
        %v2254 = vadd.f32 %v2042, %v2202
        %v2255 = vadd.f32 %v2043, %v2207
        %v2256 = vadd.f32 %v2044, %v2210
        %v2257 = vadd.f32 %v2045, %v2215
        %v2258 = vadd.f32 %v2046, %v2218
        %v2259 = vadd.f32 %v2047, %v2223
        %v2260 = vadd.f32 %v2048, %v2226
        %v2261 = vrot.slane %v221, 2
        %v2262 = vrot.slane %v222, 2
        %v2263 = vsel %vm849, %v2261, %v2262
        %v2264 = vrot.slane %v223, 2
        %v2265 = vsel %vm849, %v2262, %v2264
        %v2268 = vpack.c.bf16 %v2265, %v2263
        %s2269 = scalar_lea.vmem %s1, 16
        %v2270 = vld [vmem:[%s2269] sm:$0x3]
        %v2272 = vsel %vm420, %v2268, 0
        %v2275 = vand.u32 %v2270, %v472
        %2277 = vmatprep.subr.bf16.mxu0 0
        %2278 = vmatpush1.bf16.msra.mxu0 %v2275
        %2279 = vmatprep.subr.bf16.mxu0 0
        %2280 = vmatpush1.bf16.msra.mxu0 0
        %2281 = vmatprep.subr.bf16.mxu0 0
        %2282 = vmatpush1.bf16.msra.mxu0 0
        %2283 = vmatprep.subr.bf16.mxu0 0
        %2284 = vmatpush1.bf16.msra.mxu0 0
        %2285 = vmatprep.subr.bf16.mxu0 0
        %2286 = vmatpush1.bf16.msra.mxu0 0
        %2287 = vmatprep.subr.bf16.mxu0 0
        %2288 = vmatpush1.bf16.msra.mxu0 0
        %2289 = vmatprep.subr.bf16.mxu0 0
        %2290 = vmatpush1.bf16.msra.mxu0 0
        %2291 = vmatprep.subr.bf16.mxu0 0
        %2292 = vmatpush1.bf16.msra.mxu0 0
        %2293 = vmatprep.subr.bf16.mxu0 0
        %2294 = vmatpush1.bf16.msra.mxu0 0
        %2295 = vmatprep.subr.bf16.mxu0 0
        %2296 = vmatpush1.bf16.msra.mxu0 0
        %2297 = vmatprep.subr.bf16.mxu0 0
        %2298 = vmatpush1.bf16.msra.mxu0 0
        %2299 = vmatprep.subr.bf16.mxu0 0
        %2300 = vmatpush1.bf16.msra.mxu0 0
        %2301 = vmatprep.subr.bf16.mxu0 0
        %2302 = vmatpush1.bf16.msra.mxu0 0
        %2303 = vmatprep.subr.bf16.mxu0 0
        %2304 = vmatpush1.bf16.msra.mxu0 0
        %2305 = vmatprep.subr.bf16.mxu0 0
        %2306 = vmatpush1.bf16.msra.mxu0 0
        %2307 = vmatprep.subr.bf16.mxu0 0
        %2308 = vmatpush1.bf16.msra.mxu0 0
        %2309 = vmatprep.mubr.bf16.mxu0 0
        %2310 = vmatmul.mubr.bf16.gmra.mrb[0].mxu0 %v987
        %v2311 = vpop.f32.mrb[0].mxu0
        %v2312 = vadd.f32 0.0, %v2311
        %v2313 = vpop.f32.mrb[0].mxu0
        %v2314 = vpop.f32.mrb[0].mxu0
        %v2315 = vadd.f32 0.0, %v2314
        %v2316 = vpop.f32.mrb[0].mxu0
        %2317 = vmatprep.mubr.bf16.mxu0 0
        %2318 = vmatmul.mubr.bf16.gmra.mrb[0].mxu0 %v990
        %v2319 = vpop.f32.mrb[0].mxu0
        %v2320 = vadd.f32 0.0, %v2319
        %v2321 = vpop.f32.mrb[0].mxu0
        %v2322 = vpop.f32.mrb[0].mxu0
        %v2323 = vadd.f32 0.0, %v2322
        %v2324 = vpop.f32.mrb[0].mxu0
        %2325 = vmatprep.mubr.bf16.mxu0 0
        %2326 = vmatmul.mubr.bf16.gmra.mrb[0].mxu0 %v993
        %v2327 = vpop.f32.mrb[0].mxu0
        %v2328 = vadd.f32 0.0, %v2327
        %v2329 = vpop.f32.mrb[0].mxu0
        %v2330 = vpop.f32.mrb[0].mxu0
        %v2331 = vadd.f32 0.0, %v2330
        %v2332 = vpop.f32.mrb[0].mxu0
        %2333 = vmatprep.mubr.bf16.mxu0 0
        %2334 = vmatmul.mubr.bf16.gmra.mrb[0].mxu0 %v996
        %v2335 = vpop.f32.mrb[0].mxu0
        %v2336 = vadd.f32 0.0, %v2335
        %v2337 = vpop.f32.mrb[0].mxu0
        %v2338 = vpop.f32.mrb[0].mxu0
        %v2339 = vadd.f32 0.0, %v2338
        %v2340 = vpop.f32.mrb[0].mxu0
        %2341 = vmatprep.mubr.bf16.mxu0 0
        %2342 = vmatmul.mubr.bf16.gmra.mrb[0].mxu0 %v999
        %v2343 = vpop.f32.mrb[0].mxu0
        %v2344 = vadd.f32 0.0, %v2343
        %v2345 = vpop.f32.mrb[0].mxu0
        %v2346 = vpop.f32.mrb[0].mxu0
        %v2347 = vadd.f32 0.0, %v2346
        %v2348 = vpop.f32.mrb[0].mxu0
        %2349 = vmatprep.mubr.bf16.mxu0 0
        %2350 = vmatmul.mubr.bf16.gmra.mrb[0].mxu0 %v1002
        %v2351 = vpop.f32.mrb[0].mxu0
        %v2352 = vadd.f32 0.0, %v2351
        %v2353 = vpop.f32.mrb[0].mxu0
        %v2354 = vpop.f32.mrb[0].mxu0
        %v2355 = vadd.f32 0.0, %v2354
        %v2356 = vpop.f32.mrb[0].mxu0
        %2357 = vmatprep.mubr.bf16.mxu0 0
        %2358 = vmatmul.mubr.bf16.gmra.mrb[0].mxu0 %v1005
        %v2359 = vpop.f32.mrb[0].mxu0
        %v2360 = vadd.f32 0.0, %v2359
        %v2361 = vpop.f32.mrb[0].mxu0
        %v2362 = vpop.f32.mrb[0].mxu0
        %v2363 = vadd.f32 0.0, %v2362
        %v2364 = vpop.f32.mrb[0].mxu0
        %2365 = vmatprep.mubr.bf16.mxu0 0
        %2366 = vmatmul.mubr.bf16.gmra.mrb[0].mxu0 %v1008
        %v2367 = vpop.f32.mrb[0].mxu0
        %v2368 = vadd.f32 0.0, %v2367
        %v2369 = vpop.f32.mrb[0].mxu0
        %v2370 = vpop.f32.mrb[0].mxu0
        %v2371 = vadd.f32 0.0, %v2370
        %v2372 = vpop.f32.mrb[0].mxu0
        %2373 = vmatprep.mubr.bf16.mxu0 0
        %2374 = vmatmul.mubr.bf16.gmra.mrb[0].mxu0 %v1011
        %v2375 = vpop.f32.mrb[0].mxu0
        %v2376 = vadd.f32 0.0, %v2375
        %v2377 = vpop.f32.mrb[0].mxu0
        %v2378 = vpop.f32.mrb[0].mxu0
        %v2379 = vadd.f32 0.0, %v2378
        %v2380 = vpop.f32.mrb[0].mxu0
        %2381 = vmatprep.mubr.bf16.mxu0 0
        %2382 = vmatmul.mubr.bf16.gmra.mrb[0].mxu0 %v1014
        %v2383 = vpop.f32.mrb[0].mxu0
        %v2384 = vadd.f32 0.0, %v2383
        %v2385 = vpop.f32.mrb[0].mxu0
        %v2386 = vpop.f32.mrb[0].mxu0
        %v2387 = vadd.f32 0.0, %v2386
        %v2388 = vpop.f32.mrb[0].mxu0
        %2389 = vmatprep.mubr.bf16.mxu0 0
        %2390 = vmatmul.mubr.bf16.gmra.mrb[0].mxu0 %v1017
        %v2391 = vpop.f32.mrb[0].mxu0
        %v2392 = vadd.f32 0.0, %v2391
        %v2393 = vpop.f32.mrb[0].mxu0
        %v2394 = vpop.f32.mrb[0].mxu0
        %v2395 = vadd.f32 0.0, %v2394
        %v2396 = vpop.f32.mrb[0].mxu0
        %2397 = vmatprep.mubr.bf16.mxu0 0
        %2398 = vmatmul.mubr.bf16.gmra.mrb[0].mxu0 %v1020
        %v2399 = vpop.f32.mrb[0].mxu0
        %v2400 = vadd.f32 0.0, %v2399
        %v2401 = vpop.f32.mrb[0].mxu0
        %v2402 = vpop.f32.mrb[0].mxu0
        %v2403 = vadd.f32 0.0, %v2402
        %v2404 = vpop.f32.mrb[0].mxu0
        %2405 = vmatprep.mubr.bf16.mxu0 0
        %2406 = vmatmul.mubr.bf16.gmra.mrb[0].mxu0 %v1023
        %v2407 = vpop.f32.mrb[0].mxu0
        %v2408 = vadd.f32 0.0, %v2407
        %v2409 = vpop.f32.mrb[0].mxu0
        %v2410 = vpop.f32.mrb[0].mxu0
        %v2411 = vadd.f32 0.0, %v2410
        %v2412 = vpop.f32.mrb[0].mxu0
        %2413 = vmatprep.mubr.bf16.mxu0 0
        %2414 = vmatmul.mubr.bf16.gmra.mrb[0].mxu0 %v1026
        %v2415 = vpop.f32.mrb[0].mxu0
        %v2416 = vadd.f32 0.0, %v2415
        %v2417 = vpop.f32.mrb[0].mxu0
        %v2418 = vpop.f32.mrb[0].mxu0
        %v2419 = vadd.f32 0.0, %v2418
        %v2420 = vpop.f32.mrb[0].mxu0
        %2421 = vmatprep.mubr.bf16.mxu0 0
        %2422 = vmatmul.mubr.bf16.gmra.mrb[0].mxu0 %v1649
        %v2423 = vpop.f32.mrb[0].mxu0
        %v2424 = vadd.f32 0.0, %v2423
        %v2425 = vpop.f32.mrb[0].mxu0
        %v2426 = vpop.f32.mrb[0].mxu0
        %v2427 = vadd.f32 0.0, %v2426
        %v2428 = vpop.f32.mrb[0].mxu0
        %2429 = vmatprep.mubr.bf16.mxu0 0
        %2430 = vmatmul.mubr.bf16.gmra.mrb[0].mxu0 %v2272
        %v2431 = vpop.f32.mrb[0].mxu0
        %v2432 = vadd.f32 0.0, %v2431
        %v2433 = vpop.f32.mrb[0].mxu0
        %v2434 = vpop.f32.mrb[0].mxu0
        %v2435 = vadd.f32 0.0, %v2434
        %v2436 = vpop.f32.mrb[0].mxu0
        %2437 = vdwg.mxu0
        %v2438 = vadd.f32 %v2229, %v2312
        %v2439 = vadd.f32 %v2230, %v2315
        %v2440 = vadd.f32 %v2231, %v2320
        %v2441 = vadd.f32 %v2232, %v2323
        %v2442 = vadd.f32 %v2233, %v2328
        %v2443 = vadd.f32 %v2234, %v2331
        %v2444 = vadd.f32 %v2235, %v2336
        %v2445 = vadd.f32 %v2236, %v2339
        %v2446 = vadd.f32 %v2237, %v2344
        %v2447 = vadd.f32 %v2238, %v2347
        %v2448 = vadd.f32 %v2239, %v2352
        %v2449 = vadd.f32 %v2240, %v2355
        %v2450 = vadd.f32 %v2241, %v2360
        %v2451 = vadd.f32 %v2242, %v2363
        %v2452 = vadd.f32 %v2243, %v2368
        %v2453 = vadd.f32 %v2244, %v2371
        %v2454 = vadd.f32 %v2245, %v2376
        %v2455 = vadd.f32 %v2246, %v2379
        %v2456 = vadd.f32 %v2247, %v2384
        %v2457 = vadd.f32 %v2248, %v2387
        %v2458 = vadd.f32 %v2249, %v2392
        %v2459 = vadd.f32 %v2250, %v2395
        %v2460 = vadd.f32 %v2251, %v2400
        %v2461 = vadd.f32 %v2252, %v2403
        %v2462 = vadd.f32 %v2253, %v2408
        %v2463 = vadd.f32 %v2254, %v2411
        %v2464 = vadd.f32 %v2255, %v2416
        %v2465 = vadd.f32 %v2256, %v2419
        %v2466 = vadd.f32 %v2257, %v2424
        %v2467 = vadd.f32 %v2258, %v2427
        %v2468 = vadd.f32 %v2259, %v2432
        %v2469 = vadd.f32 %v2260, %v2435
        %v2470 = vld [vmem:[%s2] sm:$0x1]
        %v2472 = vlaneseq
        %v2473 = vshrl.u32 %v2472, 7
        %v2474 = vsub.s32 0, %v2473
        %v2475 = vrot.slane %v2470, %v2474
        %v2477 = vadd.f32 %v2438, %v2475
        %v2478 = vadd.f32 %v2439, %v2475
        %v2479 = vadd.f32 %v2440, %v2475
        %v2480 = vadd.f32 %v2441, %v2475
        %v2481 = vadd.f32 %v2442, %v2475
        %v2482 = vadd.f32 %v2443, %v2475
        %v2483 = vadd.f32 %v2444, %v2475
        %v2484 = vadd.f32 %v2445, %v2475
        %v2485 = vadd.f32 %v2446, %v2475
        %v2486 = vadd.f32 %v2447, %v2475
        %v2487 = vadd.f32 %v2448, %v2475
        %v2488 = vadd.f32 %v2449, %v2475
        %v2489 = vadd.f32 %v2450, %v2475
        %v2490 = vadd.f32 %v2451, %v2475
        %v2491 = vadd.f32 %v2452, %v2475
        %v2492 = vadd.f32 %v2453, %v2475
        %v2493 = vadd.f32 %v2454, %v2475
        %v2494 = vadd.f32 %v2455, %v2475
        %v2495 = vadd.f32 %v2456, %v2475
        %v2496 = vadd.f32 %v2457, %v2475
        %v2497 = vadd.f32 %v2458, %v2475
        %v2498 = vadd.f32 %v2459, %v2475
        %v2499 = vadd.f32 %v2460, %v2475
        %v2500 = vadd.f32 %v2461, %v2475
        %v2501 = vadd.f32 %v2462, %v2475
        %v2502 = vadd.f32 %v2463, %v2475
        %v2503 = vadd.f32 %v2464, %v2475
        %v2504 = vadd.f32 %v2465, %v2475
        %v2505 = vadd.f32 %v2466, %v2475
        %v2506 = vadd.f32 %v2467, %v2475
        %v2507 = vadd.f32 %v2468, %v2475
        %v2508 = vadd.f32 %v2469, %v2475
        %vm2509 = vcmask 261120
        %2510 = vst.msk [vmem:[%s163] sm:$0xff] %vm2509, %v2477
        %2511 = vst.msk [vmem:[%s163 + $0x8] sm:$0xff] %vm2509, %v2478
        %2512 = vst.msk [vmem:[%s163 + $0x10] sm:$0xff] %vm2509, %v2479
        %2513 = vst.msk [vmem:[%s163 + $0x18] sm:$0xff] %vm2509, %v2480
        %2514 = vst.msk [vmem:[%s163 + $0x20] sm:$0xff] %vm2509, %v2481
        %2515 = vst.msk [vmem:[%s163 + $0x28] sm:$0xff] %vm2509, %v2482
        %2516 = vst.msk [vmem:[%s163 + $0x30] sm:$0xff] %vm2509, %v2483
        %2517 = vst.msk [vmem:[%s163 + $0x38] sm:$0xff] %vm2509, %v2484
        %2518 = vst.msk [vmem:[%s163 + $0x40] sm:$0xff] %vm2509, %v2485
        %2519 = vst.msk [vmem:[%s163 + $0x48] sm:$0xff] %vm2509, %v2486
        %2520 = vst.msk [vmem:[%s163 + $0x50] sm:$0xff] %vm2509, %v2487
        %2521 = vst.msk [vmem:[%s163 + $0x58] sm:$0xff] %vm2509, %v2488
        %2522 = vst.msk [vmem:[%s163 + $0x60] sm:$0xff] %vm2509, %v2489
        %2523 = vst.msk [vmem:[%s163 + $0x68] sm:$0xff] %vm2509, %v2490
        %2524 = vst.msk [vmem:[%s163 + $0x70] sm:$0xff] %vm2509, %v2491
        %2525 = vst.msk [vmem:[%s163 + $0x78] sm:$0xff] %vm2509, %v2492
        %2526 = vst.msk [vmem:[%s163 + $0x80] sm:$0xff] %vm2509, %v2493
        %2527 = vst.msk [vmem:[%s163 + $0x88] sm:$0xff] %vm2509, %v2494
        %2528 = vst.msk [vmem:[%s163 + $0x90] sm:$0xff] %vm2509, %v2495
        %2529 = vst.msk [vmem:[%s163 + $0x98] sm:$0xff] %vm2509, %v2496
        %2530 = vst.msk [vmem:[%s163 + $0xa0] sm:$0xff] %vm2509, %v2497
        %2531 = vst.msk [vmem:[%s163 + $0xa8] sm:$0xff] %vm2509, %v2498
        %2532 = vst.msk [vmem:[%s163 + $0xb0] sm:$0xff] %vm2509, %v2499
        %2533 = vst.msk [vmem:[%s163 + $0xb8] sm:$0xff] %vm2509, %v2500
        %2534 = vst.msk [vmem:[%s163 + $0xc0] sm:$0xff] %vm2509, %v2501
        %2535 = vst.msk [vmem:[%s163 + $0xc8] sm:$0xff] %vm2509, %v2502
        %2536 = vst.msk [vmem:[%s163 + $0xd0] sm:$0xff] %vm2509, %v2503
        %2537 = vst.msk [vmem:[%s163 + $0xd8] sm:$0xff] %vm2509, %v2504
        %2538 = vst.msk [vmem:[%s163 + $0xe0] sm:$0xff] %vm2509, %v2505
        %2539 = vst.msk [vmem:[%s163 + $0xe8] sm:$0xff] %vm2509, %v2506
        %2540 = vst.msk [vmem:[%s163 + $0xf0] sm:$0xff] %vm2509, %v2507
        %2541 = vst.msk [vmem:[%s163 + $0xf8] sm:$0xff] %vm2509, %v2508
        %s2542 = sand.u32 %s93, 1
        %s2543 = scalar_lea.sflag [#allocation3], %s2542
        %s2544 = sand.u32 %s93, 1
        %s2545 = smul.addr %s2544, 256
        %s2546 = scalar_lea.vmem [#allocation2], %s2545
        // Predicated region
        $region33: #{tpu_custom_call.1} parent=31 // pred_check
          %p2547 = pneg %p103
        $region34: #{tpu_custom_call.1} parent=31 // pred_check_branch
          %2549 = sbr.rel (%p2547) target = $region36
        $region35: #{tpu_custom_call.1} parent=31 // pred_region
          %s2551 = ssub.s32 4096, 4096
          %2552 = vsyncadd %s2543, %s2551
          %s2553 = smul.addr %s17, 32
          %s2554 = smul.addr %s2553, 128
          %s2555 = scalar_lea.hbm %s3, %s2554
          %s2556 = sshll.u32 %s2546, 4
          %s2557 = int_to_ptr.vmem [resolvable:$true] %s2556
          %2562 = dma.vmem_to_hbm [thread:$0]  %s2557, 4096, %s2555, %s2543, 128, 128, 8
        $region36: #{tpu_custom_call.1} parent=31 // pred_fallthru
          _
      $region32: #{tpu_custom_call.1} parent=5 // pred_fallthru
        _
      %p2563 = scmp.le.s32.totalorder 2, %s12
      // Predicated region
      $region37: #{tpu_custom_call.1} parent=5 // pred_check
        %p2564 = pneg %p2563
      $region38: #{tpu_custom_call.1} parent=5 // pred_check_branch
        %2566 = sbr.rel (%p2564) target = $region40
      $region39: #{tpu_custom_call.1} parent=5 // pred_region
        %s2567 = ssub.s32 %s12, 2
        // Predicated region
        $region41: #{tpu_custom_call.1} parent=39 // pred_check
          %p2568 = pneg %p109
        $region42: #{tpu_custom_call.1} parent=39 // pred_check_branch
          %2570 = sbr.rel (%p2568) target = $region44
        $region43: #{tpu_custom_call.1} parent=39 // pred_region
          %s2571 = sand.u32 %s94, 1
          %s2572 = scalar_lea.sflag [#allocation3], %s2571
          %s2573 = sand.u32 %s94, 1
          %s2574 = smul.addr %s2573, 256
          %s2575 = scalar_lea.vmem [#allocation2], %s2574
          %2576 = dma.done %s2572, 4096
        $region44: #{tpu_custom_call.1} parent=39 // pred_fallthru
          _
      $region40: #{tpu_custom_call.1} parent=5 // pred_fallthru
        _
    $region6: #{tpu_custom_call.1} parent=1 // loop_footer
      %s16 = sadd.s32 1, %s12
    $region7: #{tpu_custom_call.1} parent=1 // loop_footer_branch
      %11 = sbr.rel target = $region3
    $region8: #{tpu_custom_call.1} parent=1 // loop_exit
      _
    %2577 = vsyncpa [#allocation3], 1
    %s2578 = scalar_lea.sflag [#allocation3], 1
    %2579 = vsyncpa %s2578, 1

</llo_original>
